<compile_context>
chip_gen: v6e
topology: v6e:2x2x1
jax: 0.10.0
libtpu: 0.0.40
codegen_flags: <defaults>
</compile_context>

<pallas_src>
import jax
import jax.numpy as jnp
from jax import lax
from jax.experimental import pallas as pl
from jax.experimental.pallas import tpu as pltpu


def _bigru_kernel(gxf_ref, gxb_ref, h0_ref, whf_ref, whb_ref, bhn_ref,
                  outf_ref, outb_ref, hn_ref, h_scr):
    """One time-chunk of both GRU directions (lock-step, mirrored time).

    gxf_ref : (tc, B, 3H) bf16  forward GX stream, chunk c (natural time order)
    gxb_ref : (tc, B, 3H) bf16  backward GX stream, chunk c (pre-time-reversed)
    h0_ref  : (2, B, H)   f32   initial hidden (0 = fwd, 1 = bwd)
    wh*_ref : (H, 3H)     bf16  fused recurrent weights (r|z|n)
    bhn_ref : (2, B, H)   f32   bh_n, broadcast per direction
    out*_ref: (B, tc, H)  f32   per-direction outputs (batch-major, lane-dense)
    hn_ref  : (2, B, H)   f32   final hidden (resident, written on last chunk)
    h_scr   : (2, B, H)   f32   hidden-state carry across grid steps
    """
    c = pl.program_id(0)
    n_chunks = pl.num_programs(0)
    tc = outf_ref.shape[1]
    H = hn_ref.shape[2]

    @pl.when(c == 0)
    def _():
        h_scr[...] = h0_ref[...]

    # Loop-invariant loads, hoisted out of the unrolled time loop.
    whf = whf_ref[...]                       # (H, 3H) bf16
    whb = whb_ref[...]
    bhn_f = bhn_ref[0]                       # (B, H) f32
    bhn_b = bhn_ref[1]

    hf = h_scr[0]                            # (B, H) f32
    hb = h_scr[1]

    # Static Python loop: every gx read / output store has a static offset,
    # which keeps the (B, tc, H) lane-dense output stores fully static.
    for i in range(tc):
        # bf16 MXU dots with f32 accumulation (one per direction).
        ghf = jnp.dot(hf.astype(jnp.bfloat16), whf,
                      preferred_element_type=jnp.float32)        # (B, 3H)
        ghb = jnp.dot(hb.astype(jnp.bfloat16), whb,
                      preferred_element_type=jnp.float32)

        gxf = gxf_ref[i].astype(jnp.float32)                     # (B, 3H)
        gxb = gxb_ref[i].astype(jnp.float32)

        # Gate math in f32 (mandatory on v5e; cheap everywhere).
        rf = jax.nn.sigmoid(gxf[:, :H] + ghf[:, :H])
        zf = jax.nn.sigmoid(gxf[:, H:2 * H] + ghf[:, H:2 * H])
        nf = jnp.tanh(gxf[:, 2 * H:] + rf * (ghf[:, 2 * H:] + bhn_f))
        hf = (1.0 - zf) * nf + zf * hf

        rb = jax.nn.sigmoid(gxb[:, :H] + ghb[:, :H])
        zb = jax.nn.sigmoid(gxb[:, H:2 * H] + ghb[:, H:2 * H])
        nb = jnp.tanh(gxb[:, 2 * H:] + rb * (ghb[:, 2 * H:] + bhn_b))
        hb = (1.0 - zb) * nb + zb * hb

        outf_ref[:, i, :] = hf.astype(outf_ref.dtype)
        outb_ref[:, tc - 1 - i, :] = hb.astype(outb_ref.dtype)

    h_scr[0] = hf
    h_scr[1] = hb

    @pl.when(c == n_chunks - 1)
    def _():
        hn_ref[0] = hf.astype(hn_ref.dtype)
        hn_ref[1] = hb.astype(hn_ref.dtype)


def recurrent_encoder_forward(x_bte, params, h0=None, time_chunk=16):
    """Bidirectional single-layer GRU forward (PyTorch nn.GRU semantics).

    x_bte: (B, T, E) batch_first input; h0 optional (2, B, H), defaults zeros.
    Returns (output, h_n) with output (B, T, 2H), h_n (2, B, H).
    """
    B, T, E = x_bte.shape
    H = params["wh_f"].shape[0]
    x_tbe = jnp.transpose(x_bte.astype(jnp.float32), (1, 0, 2))     # (T, B, E)

    if h0 is None:
        h0 = jnp.zeros((2, B, H), jnp.float32)
    h0 = h0.astype(jnp.float32)

    # ---- fused input projection: one (T*B, E) @ (E, 6H) matmul --------------
    # Fold bi (all gates) and bh_{r,z} into GX; bh_n stays inside r * (.).
    def fold_bias(bi, bh):
        return bi + jnp.concatenate([bh[:2 * H], jnp.zeros((H,), bh.dtype)])

    wi_cat = jnp.concatenate([params["wi_f"], params["wi_b"]], axis=1)   # (E, 6H)
    bias_cat = jnp.concatenate([fold_bias(params["bi_f"], params["bh_f"]),
                                fold_bias(params["bi_b"], params["bh_b"])])
    gx_all = (x_tbe.reshape(T * B, E) @ wi_cat + bias_cat).reshape(T, B, 6 * H)
    gx_f = gx_all[:, :, :3 * H]
    gx_b_rev = gx_all[:, :, 3 * H:][::-1]        # backward stream, processing order

    # ---- time chunking + padding with exact no-op GRU steps (z == 1) --------
    if T <= time_chunk:
        tc = T
    else:
        tc = max(8, (time_chunk // 8) * 8)       # multiple of 8 for (B, tc, H) blocks
    n_chunks = (T + tc - 1) // tc
    t_pad = n_chunks * tc
    pad = t_pad - T
    if pad:
        noop = jnp.concatenate(
            [jnp.zeros((pad, B, H), jnp.float32),
             jnp.full((pad, B, H), 1e4, jnp.float32),   # z-gate pre-act -> sigmoid = 1
             jnp.zeros((pad, B, H), jnp.float32)], axis=-1)
        gx_f = jnp.concatenate([gx_f, noop], axis=0)
        gx_b_rev = jnp.concatenate([gx_b_rev, noop], axis=0)

    # bf16 operands for the kernel (MXU-native); activations remain f32.
    gx_f = gx_f.astype(jnp.bfloat16)
    gx_b_rev = gx_b_rev.astype(jnp.bfloat16)
    whf = params["wh_f"].astype(jnp.bfloat16)
    whb = params["wh_b"].astype(jnp.bfloat16)

    bhn = jnp.stack(
        [jnp.broadcast_to(params["bh_f"][2 * H:], (B, H)),
         jnp.broadcast_to(params["bh_b"][2 * H:], (B, H))], axis=0)      # (2, B, H)

    in_specs = [
        pl.BlockSpec((tc, B, 3 * H), lambda c: (c, 0, 0)),               # GX fwd
        pl.BlockSpec((tc, B, 3 * H), lambda c: (c, 0, 0)),               # GX bwd (rev)
        pl.BlockSpec((2, B, H), lambda c: (0, 0, 0)),                    # h0
        pl.BlockSpec((H, 3 * H), lambda c: (0, 0)),                      # Wh fwd
        pl.BlockSpec((H, 3 * H), lambda c: (0, 0)),                      # Wh bwd
        pl.BlockSpec((2, B, H), lambda c: (0, 0, 0)),                    # bh_n
    ]
    out_specs = [
        pl.BlockSpec((B, tc, H), lambda c: (0, c, 0)),                   # out fwd
        pl.BlockSpec((B, tc, H), lambda c: (0, n_chunks - 1 - c, 0)),    # out bwd
        pl.BlockSpec((2, B, H), lambda c: (0, 0, 0)),                    # h_n
    ]
    out_shape = [
        jax.ShapeDtypeStruct((B, t_pad, H), jnp.float32),
        jax.ShapeDtypeStruct((B, t_pad, H), jnp.float32),
        jax.ShapeDtypeStruct((2, B, H), jnp.float32),
    ]

    out_f, out_b, h_n = pl.pallas_call(
        _bigru_kernel,
        out_shape=out_shape,
        grid_spec=pltpu.PrefetchScalarGridSpec(
            num_scalar_prefetch=0,
            grid=(n_chunks,),
            in_specs=in_specs,
            out_specs=out_specs,
            scratch_shapes=[pltpu.VMEM((2, B, H), jnp.float32)],
        ),
        compiler_params=pltpu.CompilerParams(
            dimension_semantics=("arbitrary",),      # sequential recurrence carry
            vmem_limit_bytes=48 * 1024 * 1024),
    )(gx_f, gx_b_rev, h0, whf, whb, bhn)

    # Real forward outputs live at [:, :T]; real backward outputs at [:, pad:pad+T]
    # (kernel writes them time-aligned but shifted by the pad).  Single concat,
    # no transposes.
    output = jnp.concatenate([out_f[:, :T, :], out_b[:, pad:pad + T, :]], axis=-1)
    return output, h_n


# ---------------------------------------------------------------------------
# pure-JAX reference (same math, f32, lax.scan) used to validate the kernel
# ---------------------------------------------------------------------------
def _gru_ref_dir(x_tbe, h0, wi, wh, bi, bh):
    H = wh.shape[0]

    def step(h, x):
        gx = x @ wi + bi                       # (B, 3H)
        gh = h @ wh + bh                       # (B, 3H)
        r = jax.nn.sigmoid(gx[:, :H] + gh[:, :H])
        z = jax.nn.sigmoid(gx[:, H:2 * H] + gh[:, H:2 * H])
        n = jnp.tanh(gx[:, 2 * H:] + r * gh[:, 2 * H:])
        h_new = (1.0 - z) * n + z * h
        return h_new, h_new

    h_last, ys = lax.scan(step, h0, x_tbe)
    return ys, h_last


def recurrent_encoder_ref(x_bte, params, h0=None):
    B, T, E = x_bte.shape
    H = params["wh_f"].shape[0]
    if h0 is None:
        h0 = jnp.zeros((2, B, H), jnp.float32)
    x_tbe = jnp.transpose(x_bte, (1, 0, 2)).astype(jnp.float32)
    yf, hf = _gru_ref_dir(x_tbe, h0[0], params["wi_f"], params["wh_f"],
                          params["bi_f"], params["bh_f"])
    yb_rev, hb = _gru_ref_dir(x_tbe[::-1], h0[1], params["wi_b"], params["wh_b"],
                              params["bi_b"], params["bh_b"])
    yb = yb_rev[::-1]
    out = jnp.concatenate([jnp.transpose(yf, (1, 0, 2)),
                           jnp.transpose(yb, (1, 0, 2))], axis=-1)
    return out, jnp.stack([hf, hb], axis=0)


def init_params(key, embedding_dim, hidden_dim):
    """PyTorch-style U(-1/sqrt(H), 1/sqrt(H)) init, fused (r|z|n) gate layout.

      wi_*: (E, 3H)   wh_*: (H, 3H)   bi_*/bh_*: (3H,)
    """
    scale = 1.0 / jnp.sqrt(hidden_dim)
    names_shapes = [
        ("wi_f", (embedding_dim, 3 * hidden_dim)),
        ("wh_f", (hidden_dim, 3 * hidden_dim)),
        ("bi_f", (3 * hidden_dim,)),
        ("bh_f", (3 * hidden_dim,)),
        ("wi_b", (embedding_dim, 3 * hidden_dim)),
        ("wh_b", (hidden_dim, 3 * hidden_dim)),
        ("bi_b", (3 * hidden_dim,)),
        ("bh_b", (3 * hidden_dim,)),
    ]
    keys = jax.random.split(key, len(names_shapes))
    return {name: jax.random.uniform(k, shape, jnp.float32, -scale, scale)
            for (name, shape), k in zip(names_shapes, keys)}


if __name__ == "__main__":
    # small shapes consistent with the module: batch=2, seq=8, embedding=16, hidden=32
    B, T, E, H = 2, 8, 16, 32
    root = jax.random.PRNGKey(0)
    k_x, k_p, k_x2 = jax.random.split(root, 3)
    x = jax.random.normal(k_x, (B, T, E), jnp.float32)
    params = init_params(k_p, E, H)

    out, h_n = recurrent_encoder_forward(x, params)          # hidden=None default
    out = jax.block_until_ready(out)
    h_n = jax.block_until_ready(h_n)

    out_ref, h_n_ref = recurrent_encoder_ref(x, params)
    assert out.shape == (B, T, 2 * H) and h_n.shape == (2, B, H)
    # bf16 matmul operands (f32 accumulate) => relaxed tolerance vs the f32 ref.
    assert jnp.allclose(out, out_ref, atol=4e-2, rtol=4e-2)
    assert jnp.allclose(h_n, h_n_ref, atol=4e-2, rtol=4e-2)

    # second config: exercises the multi-chunk carry and the no-op tail padding
    T2 = 12
    x2 = jax.random.normal(k_x2, (B, T2, E), jnp.float32)
    out2, h_n2 = recurrent_encoder_forward(x2, params, time_chunk=8)
    out2 = jax.block_until_ready(out2)
    h_n2 = jax.block_until_ready(h_n2)
    out2_ref, h_n2_ref = recurrent_encoder_ref(x2, params)
    assert out2.shape == (B, T2, 2 * H) and h_n2.shape == (2, B, H)
    assert jnp.allclose(out2, out2_ref, atol=4e-2, rtol=4e-2)
    assert jnp.allclose(h_n2, h_n2_ref, atol=4e-2, rtol=4e-2)

    print("KERNEL_OK")
</pallas_src>

<mosaic_0001>
module attributes {stable_mosaic.version = 11 : i64} {
  func.func @_bigru_kernel(%arg0: i32, %arg1: memref<8x2x96xbf16, #tpu.memory_space<vmem>>, %arg2: memref<8x2x96xbf16, #tpu.memory_space<vmem>>, %arg3: memref<2x2x32xf32, #tpu.memory_space<vmem>>, %arg4: memref<32x96xbf16, #tpu.memory_space<vmem>>, %arg5: memref<32x96xbf16, #tpu.memory_space<vmem>>, %arg6: memref<2x2x32xf32, #tpu.memory_space<vmem>>, %arg7: memref<2x8x32xf32, #tpu.memory_space<vmem>>, %arg8: memref<2x8x32xf32, #tpu.memory_space<vmem>>, %arg9: memref<2x2x32xf32, #tpu.memory_space<vmem>>, %arg10: memref<2x2x32xf32, #tpu.memory_space<vmem>>) attributes {dimension_semantics = [#tpu.dimension_semantics<arbitrary>], iteration_bounds = array<i64: 1>, scalar_prefetch = 0 : i64, scratch_operands = 1 : i64, tpu.core_type = #tpu.core_type<tc>, window_params = [{transform_indices = @transform_0, window_bounds = array<i64: 8, 2, 96>}, {transform_indices = @transform_1, window_bounds = array<i64: 8, 2, 96>}, {pipeline_mode = #tpu.pipeline_mode<synchronous>, transform_indices = @transform_2, window_bounds = array<i64: 2, 2, 32>}, {pipeline_mode = #tpu.pipeline_mode<synchronous>, transform_indices = @transform_3, window_bounds = array<i64: 32, 96>}, {pipeline_mode = #tpu.pipeline_mode<synchronous>, transform_indices = @transform_4, window_bounds = array<i64: 32, 96>}, {pipeline_mode = #tpu.pipeline_mode<synchronous>, transform_indices = @transform_5, window_bounds = array<i64: 2, 2, 32>}, {transform_indices = @transform_6, window_bounds = array<i64: 2, 8, 32>}, {transform_indices = @transform_7, window_bounds = array<i64: 2, 8, 32>}, {pipeline_mode = #tpu.pipeline_mode<synchronous>, transform_indices = @transform_8, window_bounds = array<i64: 2, 2, 32>}]} {
    %c0_i32 = arith.constant 0 : i32
    %0 = arith.cmpi eq, %arg0, %c0_i32 : i32
    %1 = arith.extui %0 : i1 to i32
    %c0_i32_0 = arith.constant 0 : i32
    %2 = arith.cmpi ne, %1, %c0_i32_0 : i32
    scf.if %2 {
      %c0_176 = arith.constant 0 : index
      %c0_177 = arith.constant 0 : index
      %c0_178 = arith.constant 0 : index
      %582 = vector.load %arg3[%c0_176, %c0_177, %c0_178] : memref<2x2x32xf32, #tpu.memory_space<vmem>>, vector<2x2x32xf32>
      %c0_179 = arith.constant 0 : index
      %c0_180 = arith.constant 0 : index
      %c0_181 = arith.constant 0 : index
      %583 = vector.load %arg10[%c0_179, %c0_180, %c0_181] : memref<2x2x32xf32, #tpu.memory_space<vmem>>, vector<2x2x32xf32>
      tpu.vector_store %arg10[%c0_179, %c0_180, %c0_181], %582 {strides = array<i32>} : memref<2x2x32xf32, #tpu.memory_space<vmem>>, vector<2x2x32xf32>,
    } else {
    }
    %c0 = arith.constant 0 : index
    %c0_1 = arith.constant 0 : index
    %3 = vector.load %arg4[%c0, %c0_1] : memref<32x96xbf16, #tpu.memory_space<vmem>>, vector<32x96xbf16>
    %c0_2 = arith.constant 0 : index
    %c0_3 = arith.constant 0 : index
    %4 = vector.load %arg5[%c0_2, %c0_3] : memref<32x96xbf16, #tpu.memory_space<vmem>>, vector<32x96xbf16>
    %c0_4 = arith.constant 0 : index
    %c0_5 = arith.constant 0 : index
    %c0_6 = arith.constant 0 : index
    %5 = vector.load %arg6[%c0_4, %c0_5, %c0_6] : memref<2x2x32xf32, #tpu.memory_space<vmem>>, vector<1x2x32xf32>
    %6 = vector.shape_cast %5 : vector<1x2x32xf32> to vector<2x32xf32>
    %c1 = arith.constant 1 : index
    %c0_7 = arith.constant 0 : index
    %c0_8 = arith.constant 0 : index
    %7 = vector.load %arg6[%c1, %c0_7, %c0_8] : memref<2x2x32xf32, #tpu.memory_space<vmem>>, vector<1x2x32xf32>
    %8 = vector.shape_cast %7 : vector<1x2x32xf32> to vector<2x32xf32>
    %c0_9 = arith.constant 0 : index
    %c0_10 = arith.constant 0 : index
    %c0_11 = arith.constant 0 : index
    %9 = vector.load %arg10[%c0_9, %c0_10, %c0_11] : memref<2x2x32xf32, #tpu.memory_space<vmem>>, vector<1x2x32xf32>
    %10 = vector.shape_cast %9 : vector<1x2x32xf32> to vector<2x32xf32>
    %c1_12 = arith.constant 1 : index
    %c0_13 = arith.constant 0 : index
    %c0_14 = arith.constant 0 : index
    %11 = vector.load %arg10[%c1_12, %c0_13, %c0_14] : memref<2x2x32xf32, #tpu.memory_space<vmem>>, vector<1x2x32xf32>
    %12 = vector.shape_cast %11 : vector<1x2x32xf32> to vector<2x32xf32>
    %13 = arith.truncf %10 : vector<2x32xf32> to vector<2x32xbf16>
    %cst = arith.constant dense<0.000000e+00> : vector<2x96xf32>
    %14 = tpu.matmul %13, %3, %cst {dimension_numbers = #tpu.dot_dimension_numbers<[1], [0], [0], [1], [0, 0, 1, 1], [], []>} : vector<2x32xbf16>, vector<32x96xbf16>, vector<2x96xf32> -> vector<2x96xf32>
    %15 = arith.truncf %12 : vector<2x32xf32> to vector<2x32xbf16>
    %cst_15 = arith.constant dense<0.000000e+00> : vector<2x96xf32>
    %16 = tpu.matmul %15, %4, %cst_15 {dimension_numbers = #tpu.dot_dimension_numbers<[1], [0], [0], [1], [0, 0, 1, 1], [], []>} : vector<2x32xbf16>, vector<32x96xbf16>, vector<2x96xf32> -> vector<2x96xf32>
    %c0_16 = arith.constant 0 : index
    %c0_17 = arith.constant 0 : index
    %c0_18 = arith.constant 0 : index
    %17 = vector.load %arg1[%c0_16, %c0_17, %c0_18] : memref<8x2x96xbf16, #tpu.memory_space<vmem>>, vector<1x2x96xbf16>
    %18 = vector.shape_cast %17 : vector<1x2x96xbf16> to vector<2x96xbf16>
    %19 = arith.extf %18 : vector<2x96xbf16> to vector<2x96xf32>
    %c0_19 = arith.constant 0 : index
    %c0_20 = arith.constant 0 : index
    %c0_21 = arith.constant 0 : index
    %20 = vector.load %arg2[%c0_19, %c0_20, %c0_21] : memref<8x2x96xbf16, #tpu.memory_space<vmem>>, vector<1x2x96xbf16>
    %21 = vector.shape_cast %20 : vector<1x2x96xbf16> to vector<2x96xbf16>
    %22 = arith.extf %21 : vector<2x96xbf16> to vector<2x96xf32>
    %23 = vector.extract_strided_slice %19 {offsets = [0, 0], sizes = [2, 32], strides = [1, 1]} : vector<2x96xf32> to vector<2x32xf32>
    %24 = vector.extract_strided_slice %14 {offsets = [0, 0], sizes = [2, 32], strides = [1, 1]} : vector<2x96xf32> to vector<2x32xf32>
    %25 = arith.addf %23, %24 : vector<2x32xf32>
    %26 = arith.negf %25 : vector<2x32xf32>
    %27 = math.exp %26 : vector<2x32xf32>
    %cst_22 = arith.constant 1.000000e+00 : f32
    %28 = vector.broadcast %cst_22 : f32 to vector<2x32xf32>
    %29 = arith.addf %28, %27 : vector<2x32xf32>
    %30 = arith.divf %28, %29 : vector<2x32xf32>
    %31 = vector.extract_strided_slice %19 {offsets = [0, 32], sizes = [2, 32], strides = [1, 1]} : vector<2x96xf32> to vector<2x32xf32>
    %32 = vector.extract_strided_slice %14 {offsets = [0, 32], sizes = [2, 32], strides = [1, 1]} : vector<2x96xf32> to vector<2x32xf32>
    %33 = arith.addf %31, %32 : vector<2x32xf32>
    %34 = arith.negf %33 : vector<2x32xf32>
    %35 = math.exp %34 : vector<2x32xf32>
    %cst_23 = arith.constant 1.000000e+00 : f32
    %36 = vector.broadcast %cst_23 : f32 to vector<2x32xf32>
    %37 = arith.addf %36, %35 : vector<2x32xf32>
    %38 = arith.divf %36, %37 : vector<2x32xf32>
    %39 = vector.extract_strided_slice %19 {offsets = [0, 64], sizes = [2, 32], strides = [1, 1]} : vector<2x96xf32> to vector<2x32xf32>
    %40 = vector.extract_strided_slice %14 {offsets = [0, 64], sizes = [2, 32], strides = [1, 1]} : vector<2x96xf32> to vector<2x32xf32>
    %41 = arith.addf %40, %6 : vector<2x32xf32>
    %42 = arith.mulf %30, %41 : vector<2x32xf32>
    %43 = arith.addf %39, %42 : vector<2x32xf32>
    %44 = math.tanh %43 : vector<2x32xf32>
    %cst_24 = arith.constant 1.000000e+00 : f32
    %45 = vector.broadcast %cst_24 : f32 to vector<2x32xf32>
    %46 = arith.subf %45, %38 : vector<2x32xf32>
    %47 = arith.mulf %46, %44 : vector<2x32xf32>
    %48 = arith.mulf %38, %10 : vector<2x32xf32>
    %49 = arith.addf %47, %48 : vector<2x32xf32>
    %50 = vector.extract_strided_slice %22 {offsets = [0, 0], sizes = [2, 32], strides = [1, 1]} : vector<2x96xf32> to vector<2x32xf32>
    %51 = vector.extract_strided_slice %16 {offsets = [0, 0], sizes = [2, 32], strides = [1, 1]} : vector<2x96xf32> to vector<2x32xf32>
    %52 = arith.addf %50, %51 : vector<2x32xf32>
    %53 = arith.negf %52 : vector<2x32xf32>
    %54 = math.exp %53 : vector<2x32xf32>
    %cst_25 = arith.constant 1.000000e+00 : f32
    %55 = vector.broadcast %cst_25 : f32 to vector<2x32xf32>
    %56 = arith.addf %55, %54 : vector<2x32xf32>
    %57 = arith.divf %55, %56 : vector<2x32xf32>
    %58 = vector.extract_strided_slice %22 {offsets = [0, 32], sizes = [2, 32], strides = [1, 1]} : vector<2x96xf32> to vector<2x32xf32>
    %59 = vector.extract_strided_slice %16 {offsets = [0, 32], sizes = [2, 32], strides = [1, 1]} : vector<2x96xf32> to vector<2x32xf32>
    %60 = arith.addf %58, %59 : vector<2x32xf32>
    %61 = arith.negf %60 : vector<2x32xf32>
    %62 = math.exp %61 : vector<2x32xf32>
    %cst_26 = arith.constant 1.000000e+00 : f32
    %63 = vector.broadcast %cst_26 : f32 to vector<2x32xf32>
    %64 = arith.addf %63, %62 : vector<2x32xf32>
    %65 = arith.divf %63, %64 : vector<2x32xf32>
    %66 = vector.extract_strided_slice %22 {offsets = [0, 64], sizes = [2, 32], strides = [1, 1]} : vector<2x96xf32> to vector<2x32xf32>
    %67 = vector.extract_strided_slice %16 {offsets = [0, 64], sizes = [2, 32], strides = [1, 1]} : vector<2x96xf32> to vector<2x32xf32>
    %68 = arith.addf %67, %8 : vector<2x32xf32>
    %69 = arith.mulf %57, %68 : vector<2x32xf32>
    %70 = arith.addf %66, %69 : vector<2x32xf32>
    %71 = math.tanh %70 : vector<2x32xf32>
    %cst_27 = arith.constant 1.000000e+00 : f32
    %72 = vector.broadcast %cst_27 : f32 to vector<2x32xf32>
    %73 = arith.subf %72, %65 : vector<2x32xf32>
    %74 = arith.mulf %73, %71 : vector<2x32xf32>
    %75 = arith.mulf %65, %12 : vector<2x32xf32>
    %76 = arith.addf %74, %75 : vector<2x32xf32>
    %c0_28 = arith.constant 0 : index
    %c0_29 = arith.constant 0 : index
    %c0_30 = arith.constant 0 : index
    %77 = vector.load %arg7[%c0_28, %c0_29, %c0_30] : memref<2x8x32xf32, #tpu.memory_space<vmem>>, vector<2x1x32xf32>
    %78 = vector.shape_cast %77 : vector<2x1x32xf32> to vector<2x32xf32>
    %79 = vector.shape_cast %49 : vector<2x32xf32> to vector<2x1x32xf32>
    tpu.vector_store %arg7[%c0_28, %c0_29, %c0_30], %79 {strides = array<i32>} : memref<2x8x32xf32, #tpu.memory_space<vmem>>, vector<2x1x32xf32>,
    %c0_31 = arith.constant 0 : index
    %c7 = arith.constant 7 : index
    %c0_32 = arith.constant 0 : index
    %80 = vector.load %arg8[%c0_31, %c7, %c0_32] : memref<2x8x32xf32, #tpu.memory_space<vmem>>, vector<2x1x32xf32>
    %81 = vector.shape_cast %80 : vector<2x1x32xf32> to vector<2x32xf32>
    %82 = vector.shape_cast %76 : vector<2x32xf32> to vector<2x1x32xf32>
    tpu.vector_store %arg8[%c0_31, %c7, %c0_32], %82 {strides = array<i32>} : memref<2x8x32xf32, #tpu.memory_space<vmem>>, vector<2x1x32xf32>,
    %83 = arith.truncf %49 : vector<2x32xf32> to vector<2x32xbf16>
    %cst_33 = arith.constant dense<0.000000e+00> : vector<2x96xf32>
    %84 = tpu.matmul %83, %3, %cst_33 {dimension_numbers = #tpu.dot_dimension_numbers<[1], [0], [0], [1], [0, 0, 1, 1], [], []>} : vector<2x32xbf16>, vector<32x96xbf16>, vector<2x96xf32> -> vector<2x96xf32>
    %85 = arith.truncf %76 : vector<2x32xf32> to vector<2x32xbf16>
    %cst_34 = arith.constant dense<0.000000e+00> : vector<2x96xf32>
    %86 = tpu.matmul %85, %4, %cst_34 {dimension_numbers = #tpu.dot_dimension_numbers<[1], [0], [0], [1], [0, 0, 1, 1], [], []>} : vector<2x32xbf16>, vector<32x96xbf16>, vector<2x96xf32> -> vector<2x96xf32>
    %c1_35 = arith.constant 1 : index
    %c0_36 = arith.constant 0 : index
    %c0_37 = arith.constant 0 : index
    %87 = vector.load %arg1[%c1_35, %c0_36, %c0_37] : memref<8x2x96xbf16, #tpu.memory_space<vmem>>, vector<1x2x96xbf16>
    %88 = vector.shape_cast %87 : vector<1x2x96xbf16> to vector<2x96xbf16>
    %89 = arith.extf %88 : vector<2x96xbf16> to vector<2x96xf32>
    %c1_38 = arith.constant 1 : index
    %c0_39 = arith.constant 0 : index
    %c0_40 = arith.constant 0 : index
    %90 = vector.load %arg2[%c1_38, %c0_39, %c0_40] : memref<8x2x96xbf16, #tpu.memory_space<vmem>>, vector<1x2x96xbf16>
    %91 = vector.shape_cast %90 : vector<1x2x96xbf16> to vector<2x96xbf16>
    %92 = arith.extf %91 : vector<2x96xbf16> to vector<2x96xf32>
    %93 = vector.extract_strided_slice %89 {offsets = [0, 0], sizes = [2, 32], strides = [1, 1]} : vector<2x96xf32> to vector<2x32xf32>
    %94 = vector.extract_strided_slice %84 {offsets = [0, 0], sizes = [2, 32], strides = [1, 1]} : vector<2x96xf32> to vector<2x32xf32>
    %95 = arith.addf %93, %94 : vector<2x32xf32>
    %96 = arith.negf %95 : vector<2x32xf32>
    %97 = math.exp %96 : vector<2x32xf32>
    %cst_41 = arith.constant 1.000000e+00 : f32
    %98 = vector.broadcast %cst_41 : f32 to vector<2x32xf32>
    %99 = arith.addf %98, %97 : vector<2x32xf32>
    %100 = arith.divf %98, %99 : vector<2x32xf32>
    %101 = vector.extract_strided_slice %89 {offsets = [0, 32], sizes = [2, 32], strides = [1, 1]} : vector<2x96xf32> to vector<2x32xf32>
    %102 = vector.extract_strided_slice %84 {offsets = [0, 32], sizes = [2, 32], strides = [1, 1]} : vector<2x96xf32> to vector<2x32xf32>
    %103 = arith.addf %101, %102 : vector<2x32xf32>
    %104 = arith.negf %103 : vector<2x32xf32>
    %105 = math.exp %104 : vector<2x32xf32>
    %cst_42 = arith.constant 1.000000e+00 : f32
    %106 = vector.broadcast %cst_42 : f32 to vector<2x32xf32>
    %107 = arith.addf %106, %105 : vector<2x32xf32>
    %108 = arith.divf %106, %107 : vector<2x32xf32>
    %109 = vector.extract_strided_slice %89 {offsets = [0, 64], sizes = [2, 32], strides = [1, 1]} : vector<2x96xf32> to vector<2x32xf32>
    %110 = vector.extract_strided_slice %84 {offsets = [0, 64], sizes = [2, 32], strides = [1, 1]} : vector<2x96xf32> to vector<2x32xf32>
    %111 = arith.addf %110, %6 : vector<2x32xf32>
    %112 = arith.mulf %100, %111 : vector<2x32xf32>
    %113 = arith.addf %109, %112 : vector<2x32xf32>
    %114 = math.tanh %113 : vector<2x32xf32>
    %cst_43 = arith.constant 1.000000e+00 : f32
    %115 = vector.broadcast %cst_43 : f32 to vector<2x32xf32>
    %116 = arith.subf %115, %108 : vector<2x32xf32>
    %117 = arith.mulf %116, %114 : vector<2x32xf32>
    %118 = arith.mulf %108, %49 : vector<2x32xf32>
    %119 = arith.addf %117, %118 : vector<2x32xf32>
    %120 = vector.extract_strided_slice %92 {offsets = [0, 0], sizes = [2, 32], strides = [1, 1]} : vector<2x96xf32> to vector<2x32xf32>
    %121 = vector.extract_strided_slice %86 {offsets = [0, 0], sizes = [2, 32], strides = [1, 1]} : vector<2x96xf32> to vector<2x32xf32>
    %122 = arith.addf %120, %121 : vector<2x32xf32>
    %123 = arith.negf %122 : vector<2x32xf32>
    %124 = math.exp %123 : vector<2x32xf32>
    %cst_44 = arith.constant 1.000000e+00 : f32
    %125 = vector.broadcast %cst_44 : f32 to vector<2x32xf32>
    %126 = arith.addf %125, %124 : vector<2x32xf32>
    %127 = arith.divf %125, %126 : vector<2x32xf32>
    %128 = vector.extract_strided_slice %92 {offsets = [0, 32], sizes = [2, 32], strides = [1, 1]} : vector<2x96xf32> to vector<2x32xf32>
    %129 = vector.extract_strided_slice %86 {offsets = [0, 32], sizes = [2, 32], strides = [1, 1]} : vector<2x96xf32> to vector<2x32xf32>
    %130 = arith.addf %128, %129 : vector<2x32xf32>
    %131 = arith.negf %130 : vector<2x32xf32>
    %132 = math.exp %131 : vector<2x32xf32>
    %cst_45 = arith.constant 1.000000e+00 : f32
    %133 = vector.broadcast %cst_45 : f32 to vector<2x32xf32>
    %134 = arith.addf %133, %132 : vector<2x32xf32>
    %135 = arith.divf %133, %134 : vector<2x32xf32>
    %136 = vector.extract_strided_slice %92 {offsets = [0, 64], sizes = [2, 32], strides = [1, 1]} : vector<2x96xf32> to vector<2x32xf32>
    %137 = vector.extract_strided_slice %86 {offsets = [0, 64], sizes = [2, 32], strides = [1, 1]} : vector<2x96xf32> to vector<2x32xf32>
    %138 = arith.addf %137, %8 : vector<2x32xf32>
    %139 = arith.mulf %127, %138 : vector<2x32xf32>
    %140 = arith.addf %136, %139 : vector<2x32xf32>
    %141 = math.tanh %140 : vector<2x32xf32>
    %cst_46 = arith.constant 1.000000e+00 : f32
    %142 = vector.broadcast %cst_46 : f32 to vector<2x32xf32>
    %143 = arith.subf %142, %135 : vector<2x32xf32>
    %144 = arith.mulf %143, %141 : vector<2x32xf32>
    %145 = arith.mulf %135, %76 : vector<2x32xf32>
    %146 = arith.addf %144, %145 : vector<2x32xf32>
    %c0_47 = arith.constant 0 : index
    %c1_48 = arith.constant 1 : index
    %c0_49 = arith.constant 0 : index
    %147 = vector.load %arg7[%c0_47, %c1_48, %c0_49] : memref<2x8x32xf32, #tpu.memory_space<vmem>>, vector<2x1x32xf32>
    %148 = vector.shape_cast %147 : vector<2x1x32xf32> to vector<2x32xf32>
    %149 = vector.shape_cast %119 : vector<2x32xf32> to vector<2x1x32xf32>
    tpu.vector_store %arg7[%c0_47, %c1_48, %c0_49], %149 {strides = array<i32>} : memref<2x8x32xf32, #tpu.memory_space<vmem>>, vector<2x1x32xf32>,
    %c0_50 = arith.constant 0 : index
    %c6 = arith.constant 6 : index
    %c0_51 = arith.constant 0 : index
    %150 = vector.load %arg8[%c0_50, %c6, %c0_51] : memref<2x8x32xf32, #tpu.memory_space<vmem>>, vector<2x1x32xf32>
    %151 = vector.shape_cast %150 : vector<2x1x32xf32> to vector<2x32xf32>
    %152 = vector.shape_cast %146 : vector<2x32xf32> to vector<2x1x32xf32>
    tpu.vector_store %arg8[%c0_50, %c6, %c0_51], %152 {strides = array<i32>} : memref<2x8x32xf32, #tpu.memory_space<vmem>>, vector<2x1x32xf32>,
    %153 = arith.truncf %119 : vector<2x32xf32> to vector<2x32xbf16>
    %cst_52 = arith.constant dense<0.000000e+00> : vector<2x96xf32>
    %154 = tpu.matmul %153, %3, %cst_52 {dimension_numbers = #tpu.dot_dimension_numbers<[1], [0], [0], [1], [0, 0, 1, 1], [], []>} : vector<2x32xbf16>, vector<32x96xbf16>, vector<2x96xf32> -> vector<2x96xf32>
    %155 = arith.truncf %146 : vector<2x32xf32> to vector<2x32xbf16>
    %cst_53 = arith.constant dense<0.000000e+00> : vector<2x96xf32>
    %156 = tpu.matmul %155, %4, %cst_53 {dimension_numbers = #tpu.dot_dimension_numbers<[1], [0], [0], [1], [0, 0, 1, 1], [], []>} : vector<2x32xbf16>, vector<32x96xbf16>, vector<2x96xf32> -> vector<2x96xf32>
    %c2 = arith.constant 2 : index
    %c0_54 = arith.constant 0 : index
    %c0_55 = arith.constant 0 : index
    %157 = vector.load %arg1[%c2, %c0_54, %c0_55] : memref<8x2x96xbf16, #tpu.memory_space<vmem>>, vector<1x2x96xbf16>
    %158 = vector.shape_cast %157 : vector<1x2x96xbf16> to vector<2x96xbf16>
    %159 = arith.extf %158 : vector<2x96xbf16> to vector<2x96xf32>
    %c2_56 = arith.constant 2 : index
    %c0_57 = arith.constant 0 : index
    %c0_58 = arith.constant 0 : index
    %160 = vector.load %arg2[%c2_56, %c0_57, %c0_58] : memref<8x2x96xbf16, #tpu.memory_space<vmem>>, vector<1x2x96xbf16>
    %161 = vector.shape_cast %160 : vector<1x2x96xbf16> to vector<2x96xbf16>
    %162 = arith.extf %161 : vector<2x96xbf16> to vector<2x96xf32>
    %163 = vector.extract_strided_slice %159 {offsets = [0, 0], sizes = [2, 32], strides = [1, 1]} : vector<2x96xf32> to vector<2x32xf32>
    %164 = vector.extract_strided_slice %154 {offsets = [0, 0], sizes = [2, 32], strides = [1, 1]} : vector<2x96xf32> to vector<2x32xf32>
    %165 = arith.addf %163, %164 : vector<2x32xf32>
    %166 = arith.negf %165 : vector<2x32xf32>
    %167 = math.exp %166 : vector<2x32xf32>
    %cst_59 = arith.constant 1.000000e+00 : f32
    %168 = vector.broadcast %cst_59 : f32 to vector<2x32xf32>
    %169 = arith.addf %168, %167 : vector<2x32xf32>
    %170 = arith.divf %168, %169 : vector<2x32xf32>
    %171 = vector.extract_strided_slice %159 {offsets = [0, 32], sizes = [2, 32], strides = [1, 1]} : vector<2x96xf32> to vector<2x32xf32>
    %172 = vector.extract_strided_slice %154 {offsets = [0, 32], sizes = [2, 32], strides = [1, 1]} : vector<2x96xf32> to vector<2x32xf32>
    %173 = arith.addf %171, %172 : vector<2x32xf32>
    %174 = arith.negf %173 : vector<2x32xf32>
    %175 = math.exp %174 : vector<2x32xf32>
    %cst_60 = arith.constant 1.000000e+00 : f32
    %176 = vector.broadcast %cst_60 : f32 to vector<2x32xf32>
    %177 = arith.addf %176, %175 : vector<2x32xf32>
    %178 = arith.divf %176, %177 : vector<2x32xf32>
    %179 = vector.extract_strided_slice %159 {offsets = [0, 64], sizes = [2, 32], strides = [1, 1]} : vector<2x96xf32> to vector<2x32xf32>
    %180 = vector.extract_strided_slice %154 {offsets = [0, 64], sizes = [2, 32], strides = [1, 1]} : vector<2x96xf32> to vector<2x32xf32>
    %181 = arith.addf %180, %6 : vector<2x32xf32>
    %182 = arith.mulf %170, %181 : vector<2x32xf32>
    %183 = arith.addf %179, %182 : vector<2x32xf32>
    %184 = math.tanh %183 : vector<2x32xf32>
    %cst_61 = arith.constant 1.000000e+00 : f32
    %185 = vector.broadcast %cst_61 : f32 to vector<2x32xf32>
    %186 = arith.subf %185, %178 : vector<2x32xf32>
    %187 = arith.mulf %186, %184 : vector<2x32xf32>
    %188 = arith.mulf %178, %119 : vector<2x32xf32>
    %189 = arith.addf %187, %188 : vector<2x32xf32>
    %190 = vector.extract_strided_slice %162 {offsets = [0, 0], sizes = [2, 32], strides = [1, 1]} : vector<2x96xf32> to vector<2x32xf32>
    %191 = vector.extract_strided_slice %156 {offsets = [0, 0], sizes = [2, 32], strides = [1, 1]} : vector<2x96xf32> to vector<2x32xf32>
    %192 = arith.addf %190, %191 : vector<2x32xf32>
    %193 = arith.negf %192 : vector<2x32xf32>
    %194 = math.exp %193 : vector<2x32xf32>
    %cst_62 = arith.constant 1.000000e+00 : f32
    %195 = vector.broadcast %cst_62 : f32 to vector<2x32xf32>
    %196 = arith.addf %195, %194 : vector<2x32xf32>
    %197 = arith.divf %195, %196 : vector<2x32xf32>
    %198 = vector.extract_strided_slice %162 {offsets = [0, 32], sizes = [2, 32], strides = [1, 1]} : vector<2x96xf32> to vector<2x32xf32>
    %199 = vector.extract_strided_slice %156 {offsets = [0, 32], sizes = [2, 32], strides = [1, 1]} : vector<2x96xf32> to vector<2x32xf32>
    %200 = arith.addf %198, %199 : vector<2x32xf32>
    %201 = arith.negf %200 : vector<2x32xf32>
    %202 = math.exp %201 : vector<2x32xf32>
    %cst_63 = arith.constant 1.000000e+00 : f32
    %203 = vector.broadcast %cst_63 : f32 to vector<2x32xf32>
    %204 = arith.addf %203, %202 : vector<2x32xf32>
    %205 = arith.divf %203, %204 : vector<2x32xf32>
    %206 = vector.extract_strided_slice %162 {offsets = [0, 64], sizes = [2, 32], strides = [1, 1]} : vector<2x96xf32> to vector<2x32xf32>
    %207 = vector.extract_strided_slice %156 {offsets = [0, 64], sizes = [2, 32], strides = [1, 1]} : vector<2x96xf32> to vector<2x32xf32>
    %208 = arith.addf %207, %8 : vector<2x32xf32>
    %209 = arith.mulf %197, %208 : vector<2x32xf32>
    %210 = arith.addf %206, %209 : vector<2x32xf32>
    %211 = math.tanh %210 : vector<2x32xf32>
    %cst_64 = arith.constant 1.000000e+00 : f32
    %212 = vector.broadcast %cst_64 : f32 to vector<2x32xf32>
    %213 = arith.subf %212, %205 : vector<2x32xf32>
    %214 = arith.mulf %213, %211 : vector<2x32xf32>
    %215 = arith.mulf %205, %146 : vector<2x32xf32>
    %216 = arith.addf %214, %215 : vector<2x32xf32>
    %c0_65 = arith.constant 0 : index
    %c2_66 = arith.constant 2 : index
    %c0_67 = arith.constant 0 : index
    %217 = vector.load %arg7[%c0_65, %c2_66, %c0_67] : memref<2x8x32xf32, #tpu.memory_space<vmem>>, vector<2x1x32xf32>
    %218 = vector.shape_cast %217 : vector<2x1x32xf32> to vector<2x32xf32>
    %219 = vector.shape_cast %189 : vector<2x32xf32> to vector<2x1x32xf32>
    tpu.vector_store %arg7[%c0_65, %c2_66, %c0_67], %219 {strides = array<i32>} : memref<2x8x32xf32, #tpu.memory_space<vmem>>, vector<2x1x32xf32>,
    %c0_68 = arith.constant 0 : index
    %c5 = arith.constant 5 : index
    %c0_69 = arith.constant 0 : index
    %220 = vector.load %arg8[%c0_68, %c5, %c0_69] : memref<2x8x32xf32, #tpu.memory_space<vmem>>, vector<2x1x32xf32>
    %221 = vector.shape_cast %220 : vector<2x1x32xf32> to vector<2x32xf32>
    %222 = vector.shape_cast %216 : vector<2x32xf32> to vector<2x1x32xf32>
    tpu.vector_store %arg8[%c0_68, %c5, %c0_69], %222 {strides = array<i32>} : memref<2x8x32xf32, #tpu.memory_space<vmem>>, vector<2x1x32xf32>,
    %223 = arith.truncf %189 : vector<2x32xf32> to vector<2x32xbf16>
    %cst_70 = arith.constant dense<0.000000e+00> : vector<2x96xf32>
    %224 = tpu.matmul %223, %3, %cst_70 {dimension_numbers = #tpu.dot_dimension_numbers<[1], [0], [0], [1], [0, 0, 1, 1], [], []>} : vector<2x32xbf16>, vector<32x96xbf16>, vector<2x96xf32> -> vector<2x96xf32>
    %225 = arith.truncf %216 : vector<2x32xf32> to vector<2x32xbf16>
    %cst_71 = arith.constant dense<0.000000e+00> : vector<2x96xf32>
    %226 = tpu.matmul %225, %4, %cst_71 {dimension_numbers = #tpu.dot_dimension_numbers<[1], [0], [0], [1], [0, 0, 1, 1], [], []>} : vector<2x32xbf16>, vector<32x96xbf16>, vector<2x96xf32> -> vector<2x96xf32>
    %c3 = arith.constant 3 : index
    %c0_72 = arith.constant 0 : index
    %c0_73 = arith.constant 0 : index
    %227 = vector.load %arg1[%c3, %c0_72, %c0_73] : memref<8x2x96xbf16, #tpu.memory_space<vmem>>, vector<1x2x96xbf16>
    %228 = vector.shape_cast %227 : vector<1x2x96xbf16> to vector<2x96xbf16>
    %229 = arith.extf %228 : vector<2x96xbf16> to vector<2x96xf32>
    %c3_74 = arith.constant 3 : index
    %c0_75 = arith.constant 0 : index
    %c0_76 = arith.constant 0 : index
    %230 = vector.load %arg2[%c3_74, %c0_75, %c0_76] : memref<8x2x96xbf16, #tpu.memory_space<vmem>>, vector<1x2x96xbf16>
    %231 = vector.shape_cast %230 : vector<1x2x96xbf16> to vector<2x96xbf16>
    %232 = arith.extf %231 : vector<2x96xbf16> to vector<2x96xf32>
    %233 = vector.extract_strided_slice %229 {offsets = [0, 0], sizes = [2, 32], strides = [1, 1]} : vector<2x96xf32> to vector<2x32xf32>
    %234 = vector.extract_strided_slice %224 {offsets = [0, 0], sizes = [2, 32], strides = [1, 1]} : vector<2x96xf32> to vector<2x32xf32>
    %235 = arith.addf %233, %234 : vector<2x32xf32>
    %236 = arith.negf %235 : vector<2x32xf32>
    %237 = math.exp %236 : vector<2x32xf32>
    %cst_77 = arith.constant 1.000000e+00 : f32
    %238 = vector.broadcast %cst_77 : f32 to vector<2x32xf32>
    %239 = arith.addf %238, %237 : vector<2x32xf32>
    %240 = arith.divf %238, %239 : vector<2x32xf32>
    %241 = vector.extract_strided_slice %229 {offsets = [0, 32], sizes = [2, 32], strides = [1, 1]} : vector<2x96xf32> to vector<2x32xf32>
    %242 = vector.extract_strided_slice %224 {offsets = [0, 32], sizes = [2, 32], strides = [1, 1]} : vector<2x96xf32> to vector<2x32xf32>
    %243 = arith.addf %241, %242 : vector<2x32xf32>
    %244 = arith.negf %243 : vector<2x32xf32>
    %245 = math.exp %244 : vector<2x32xf32>
    %cst_78 = arith.constant 1.000000e+00 : f32
    %246 = vector.broadcast %cst_78 : f32 to vector<2x32xf32>
    %247 = arith.addf %246, %245 : vector<2x32xf32>
    %248 = arith.divf %246, %247 : vector<2x32xf32>
    %249 = vector.extract_strided_slice %229 {offsets = [0, 64], sizes = [2, 32], strides = [1, 1]} : vector<2x96xf32> to vector<2x32xf32>
    %250 = vector.extract_strided_slice %224 {offsets = [0, 64], sizes = [2, 32], strides = [1, 1]} : vector<2x96xf32> to vector<2x32xf32>
    %251 = arith.addf %250, %6 : vector<2x32xf32>
    %252 = arith.mulf %240, %251 : vector<2x32xf32>
    %253 = arith.addf %249, %252 : vector<2x32xf32>
    %254 = math.tanh %253 : vector<2x32xf32>
    %cst_79 = arith.constant 1.000000e+00 : f32
    %255 = vector.broadcast %cst_79 : f32 to vector<2x32xf32>
    %256 = arith.subf %255, %248 : vector<2x32xf32>
    %257 = arith.mulf %256, %254 : vector<2x32xf32>
    %258 = arith.mulf %248, %189 : vector<2x32xf32>
    %259 = arith.addf %257, %258 : vector<2x32xf32>
    %260 = vector.extract_strided_slice %232 {offsets = [0, 0], sizes = [2, 32], strides = [1, 1]} : vector<2x96xf32> to vector<2x32xf32>
    %261 = vector.extract_strided_slice %226 {offsets = [0, 0], sizes = [2, 32], strides = [1, 1]} : vector<2x96xf32> to vector<2x32xf32>
    %262 = arith.addf %260, %261 : vector<2x32xf32>
    %263 = arith.negf %262 : vector<2x32xf32>
    %264 = math.exp %263 : vector<2x32xf32>
    %cst_80 = arith.constant 1.000000e+00 : f32
    %265 = vector.broadcast %cst_80 : f32 to vector<2x32xf32>
    %266 = arith.addf %265, %264 : vector<2x32xf32>
    %267 = arith.divf %265, %266 : vector<2x32xf32>
    %268 = vector.extract_strided_slice %232 {offsets = [0, 32], sizes = [2, 32], strides = [1, 1]} : vector<2x96xf32> to vector<2x32xf32>
    %269 = vector.extract_strided_slice %226 {offsets = [0, 32], sizes = [2, 32], strides = [1, 1]} : vector<2x96xf32> to vector<2x32xf32>
    %270 = arith.addf %268, %269 : vector<2x32xf32>
    %271 = arith.negf %270 : vector<2x32xf32>
    %272 = math.exp %271 : vector<2x32xf32>
    %cst_81 = arith.constant 1.000000e+00 : f32
    %273 = vector.broadcast %cst_81 : f32 to vector<2x32xf32>
    %274 = arith.addf %273, %272 : vector<2x32xf32>
    %275 = arith.divf %273, %274 : vector<2x32xf32>
    %276 = vector.extract_strided_slice %232 {offsets = [0, 64], sizes = [2, 32], strides = [1, 1]} : vector<2x96xf32> to vector<2x32xf32>
    %277 = vector.extract_strided_slice %226 {offsets = [0, 64], sizes = [2, 32], strides = [1, 1]} : vector<2x96xf32> to vector<2x32xf32>
    %278 = arith.addf %277, %8 : vector<2x32xf32>
    %279 = arith.mulf %267, %278 : vector<2x32xf32>
    %280 = arith.addf %276, %279 : vector<2x32xf32>
    %281 = math.tanh %280 : vector<2x32xf32>
    %cst_82 = arith.constant 1.000000e+00 : f32
    %282 = vector.broadcast %cst_82 : f32 to vector<2x32xf32>
    %283 = arith.subf %282, %275 : vector<2x32xf32>
    %284 = arith.mulf %283, %281 : vector<2x32xf32>
    %285 = arith.mulf %275, %216 : vector<2x32xf32>
    %286 = arith.addf %284, %285 : vector<2x32xf32>
    %c0_83 = arith.constant 0 : index
    %c3_84 = arith.constant 3 : index
    %c0_85 = arith.constant 0 : index
    %287 = vector.load %arg7[%c0_83, %c3_84, %c0_85] : memref<2x8x32xf32, #tpu.memory_space<vmem>>, vector<2x1x32xf32>
    %288 = vector.shape_cast %287 : vector<2x1x32xf32> to vector<2x32xf32>
    %289 = vector.shape_cast %259 : vector<2x32xf32> to vector<2x1x32xf32>
    tpu.vector_store %arg7[%c0_83, %c3_84, %c0_85], %289 {strides = array<i32>} : memref<2x8x32xf32, #tpu.memory_space<vmem>>, vector<2x1x32xf32>,
    %c0_86 = arith.constant 0 : index
    %c4 = arith.constant 4 : index
    %c0_87 = arith.constant 0 : index
    %290 = vector.load %arg8[%c0_86, %c4, %c0_87] : memref<2x8x32xf32, #tpu.memory_space<vmem>>, vector<2x1x32xf32>
    %291 = vector.shape_cast %290 : vector<2x1x32xf32> to vector<2x32xf32>
    %292 = vector.shape_cast %286 : vector<2x32xf32> to vector<2x1x32xf32>
    tpu.vector_store %arg8[%c0_86, %c4, %c0_87], %292 {strides = array<i32>} : memref<2x8x32xf32, #tpu.memory_space<vmem>>, vector<2x1x32xf32>,
    %293 = arith.truncf %259 : vector<2x32xf32> to vector<2x32xbf16>
    %cst_88 = arith.constant dense<0.000000e+00> : vector<2x96xf32>
    %294 = tpu.matmul %293, %3, %cst_88 {dimension_numbers = #tpu.dot_dimension_numbers<[1], [0], [0], [1], [0, 0, 1, 1], [], []>} : vector<2x32xbf16>, vector<32x96xbf16>, vector<2x96xf32> -> vector<2x96xf32>
    %295 = arith.truncf %286 : vector<2x32xf32> to vector<2x32xbf16>
    %cst_89 = arith.constant dense<0.000000e+00> : vector<2x96xf32>
    %296 = tpu.matmul %295, %4, %cst_89 {dimension_numbers = #tpu.dot_dimension_numbers<[1], [0], [0], [1], [0, 0, 1, 1], [], []>} : vector<2x32xbf16>, vector<32x96xbf16>, vector<2x96xf32> -> vector<2x96xf32>
    %c4_90 = arith.constant 4 : index
    %c0_91 = arith.constant 0 : index
    %c0_92 = arith.constant 0 : index
    %297 = vector.load %arg1[%c4_90, %c0_91, %c0_92] : memref<8x2x96xbf16, #tpu.memory_space<vmem>>, vector<1x2x96xbf16>
    %298 = vector.shape_cast %297 : vector<1x2x96xbf16> to vector<2x96xbf16>
    %299 = arith.extf %298 : vector<2x96xbf16> to vector<2x96xf32>
    %c4_93 = arith.constant 4 : index
    %c0_94 = arith.constant 0 : index
    %c0_95 = arith.constant 0 : index
    %300 = vector.load %arg2[%c4_93, %c0_94, %c0_95] : memref<8x2x96xbf16, #tpu.memory_space<vmem>>, vector<1x2x96xbf16>
    %301 = vector.shape_cast %300 : vector<1x2x96xbf16> to vector<2x96xbf16>
    %302 = arith.extf %301 : vector<2x96xbf16> to vector<2x96xf32>
    %303 = vector.extract_strided_slice %299 {offsets = [0, 0], sizes = [2, 32], strides = [1, 1]} : vector<2x96xf32> to vector<2x32xf32>
    %304 = vector.extract_strided_slice %294 {offsets = [0, 0], sizes = [2, 32], strides = [1, 1]} : vector<2x96xf32> to vector<2x32xf32>
    %305 = arith.addf %303, %304 : vector<2x32xf32>
    %306 = arith.negf %305 : vector<2x32xf32>
    %307 = math.exp %306 : vector<2x32xf32>
    %cst_96 = arith.constant 1.000000e+00 : f32
    %308 = vector.broadcast %cst_96 : f32 to vector<2x32xf32>
    %309 = arith.addf %308, %307 : vector<2x32xf32>
    %310 = arith.divf %308, %309 : vector<2x32xf32>
    %311 = vector.extract_strided_slice %299 {offsets = [0, 32], sizes = [2, 32], strides = [1, 1]} : vector<2x96xf32> to vector<2x32xf32>
    %312 = vector.extract_strided_slice %294 {offsets = [0, 32], sizes = [2, 32], strides = [1, 1]} : vector<2x96xf32> to vector<2x32xf32>
    %313 = arith.addf %311, %312 : vector<2x32xf32>
    %314 = arith.negf %313 : vector<2x32xf32>
    %315 = math.exp %314 : vector<2x32xf32>
    %cst_97 = arith.constant 1.000000e+00 : f32
    %316 = vector.broadcast %cst_97 : f32 to vector<2x32xf32>
    %317 = arith.addf %316, %315 : vector<2x32xf32>
    %318 = arith.divf %316, %317 : vector<2x32xf32>
    %319 = vector.extract_strided_slice %299 {offsets = [0, 64], sizes = [2, 32], strides = [1, 1]} : vector<2x96xf32> to vector<2x32xf32>
    %320 = vector.extract_strided_slice %294 {offsets = [0, 64], sizes = [2, 32], strides = [1, 1]} : vector<2x96xf32> to vector<2x32xf32>
    %321 = arith.addf %320, %6 : vector<2x32xf32>
    %322 = arith.mulf %310, %321 : vector<2x32xf32>
    %323 = arith.addf %319, %322 : vector<2x32xf32>
    %324 = math.tanh %323 : vector<2x32xf32>
    %cst_98 = arith.constant 1.000000e+00 : f32
    %325 = vector.broadcast %cst_98 : f32 to vector<2x32xf32>
    %326 = arith.subf %325, %318 : vector<2x32xf32>
    %327 = arith.mulf %326, %324 : vector<2x32xf32>
    %328 = arith.mulf %318, %259 : vector<2x32xf32>
    %329 = arith.addf %327, %328 : vector<2x32xf32>
    %330 = vector.extract_strided_slice %302 {offsets = [0, 0], sizes = [2, 32], strides = [1, 1]} : vector<2x96xf32> to vector<2x32xf32>
    %331 = vector.extract_strided_slice %296 {offsets = [0, 0], sizes = [2, 32], strides = [1, 1]} : vector<2x96xf32> to vector<2x32xf32>
    %332 = arith.addf %330, %331 : vector<2x32xf32>
    %333 = arith.negf %332 : vector<2x32xf32>
    %334 = math.exp %333 : vector<2x32xf32>
    %cst_99 = arith.constant 1.000000e+00 : f32
    %335 = vector.broadcast %cst_99 : f32 to vector<2x32xf32>
    %336 = arith.addf %335, %334 : vector<2x32xf32>
    %337 = arith.divf %335, %336 : vector<2x32xf32>
    %338 = vector.extract_strided_slice %302 {offsets = [0, 32], sizes = [2, 32], strides = [1, 1]} : vector<2x96xf32> to vector<2x32xf32>
    %339 = vector.extract_strided_slice %296 {offsets = [0, 32], sizes = [2, 32], strides = [1, 1]} : vector<2x96xf32> to vector<2x32xf32>
    %340 = arith.addf %338, %339 : vector<2x32xf32>
    %341 = arith.negf %340 : vector<2x32xf32>
    %342 = math.exp %341 : vector<2x32xf32>
    %cst_100 = arith.constant 1.000000e+00 : f32
    %343 = vector.broadcast %cst_100 : f32 to vector<2x32xf32>
    %344 = arith.addf %343, %342 : vector<2x32xf32>
    %345 = arith.divf %343, %344 : vector<2x32xf32>
    %346 = vector.extract_strided_slice %302 {offsets = [0, 64], sizes = [2, 32], strides = [1, 1]} : vector<2x96xf32> to vector<2x32xf32>
    %347 = vector.extract_strided_slice %296 {offsets = [0, 64], sizes = [2, 32], strides = [1, 1]} : vector<2x96xf32> to vector<2x32xf32>
    %348 = arith.addf %347, %8 : vector<2x32xf32>
    %349 = arith.mulf %337, %348 : vector<2x32xf32>
    %350 = arith.addf %346, %349 : vector<2x32xf32>
    %351 = math.tanh %350 : vector<2x32xf32>
    %cst_101 = arith.constant 1.000000e+00 : f32
    %352 = vector.broadcast %cst_101 : f32 to vector<2x32xf32>
    %353 = arith.subf %352, %345 : vector<2x32xf32>
    %354 = arith.mulf %353, %351 : vector<2x32xf32>
    %355 = arith.mulf %345, %286 : vector<2x32xf32>
    %356 = arith.addf %354, %355 : vector<2x32xf32>
    %c0_102 = arith.constant 0 : index
    %c4_103 = arith.constant 4 : index
    %c0_104 = arith.constant 0 : index
    %357 = vector.load %arg7[%c0_102, %c4_103, %c0_104] : memref<2x8x32xf32, #tpu.memory_space<vmem>>, vector<2x1x32xf32>
    %358 = vector.shape_cast %357 : vector<2x1x32xf32> to vector<2x32xf32>
    %359 = vector.shape_cast %329 : vector<2x32xf32> to vector<2x1x32xf32>
    tpu.vector_store %arg7[%c0_102, %c4_103, %c0_104], %359 {strides = array<i32>} : memref<2x8x32xf32, #tpu.memory_space<vmem>>, vector<2x1x32xf32>,
    %c0_105 = arith.constant 0 : index
    %c3_106 = arith.constant 3 : index
    %c0_107 = arith.constant 0 : index
    %360 = vector.load %arg8[%c0_105, %c3_106, %c0_107] : memref<2x8x32xf32, #tpu.memory_space<vmem>>, vector<2x1x32xf32>
    %361 = vector.shape_cast %360 : vector<2x1x32xf32> to vector<2x32xf32>
    %362 = vector.shape_cast %356 : vector<2x32xf32> to vector<2x1x32xf32>
    tpu.vector_store %arg8[%c0_105, %c3_106, %c0_107], %362 {strides = array<i32>} : memref<2x8x32xf32, #tpu.memory_space<vmem>>, vector<2x1x32xf32>,
    %363 = arith.truncf %329 : vector<2x32xf32> to vector<2x32xbf16>
    %cst_108 = arith.constant dense<0.000000e+00> : vector<2x96xf32>
    %364 = tpu.matmul %363, %3, %cst_108 {dimension_numbers = #tpu.dot_dimension_numbers<[1], [0], [0], [1], [0, 0, 1, 1], [], []>} : vector<2x32xbf16>, vector<32x96xbf16>, vector<2x96xf32> -> vector<2x96xf32>
    %365 = arith.truncf %356 : vector<2x32xf32> to vector<2x32xbf16>
    %cst_109 = arith.constant dense<0.000000e+00> : vector<2x96xf32>
    %366 = tpu.matmul %365, %4, %cst_109 {dimension_numbers = #tpu.dot_dimension_numbers<[1], [0], [0], [1], [0, 0, 1, 1], [], []>} : vector<2x32xbf16>, vector<32x96xbf16>, vector<2x96xf32> -> vector<2x96xf32>
    %c5_110 = arith.constant 5 : index
    %c0_111 = arith.constant 0 : index
    %c0_112 = arith.constant 0 : index
    %367 = vector.load %arg1[%c5_110, %c0_111, %c0_112] : memref<8x2x96xbf16, #tpu.memory_space<vmem>>, vector<1x2x96xbf16>
    %368 = vector.shape_cast %367 : vector<1x2x96xbf16> to vector<2x96xbf16>
    %369 = arith.extf %368 : vector<2x96xbf16> to vector<2x96xf32>
    %c5_113 = arith.constant 5 : index
    %c0_114 = arith.constant 0 : index
    %c0_115 = arith.constant 0 : index
    %370 = vector.load %arg2[%c5_113, %c0_114, %c0_115] : memref<8x2x96xbf16, #tpu.memory_space<vmem>>, vector<1x2x96xbf16>
    %371 = vector.shape_cast %370 : vector<1x2x96xbf16> to vector<2x96xbf16>
    %372 = arith.extf %371 : vector<2x96xbf16> to vector<2x96xf32>
    %373 = vector.extract_strided_slice %369 {offsets = [0, 0], sizes = [2, 32], strides = [1, 1]} : vector<2x96xf32> to vector<2x32xf32>
    %374 = vector.extract_strided_slice %364 {offsets = [0, 0], sizes = [2, 32], strides = [1, 1]} : vector<2x96xf32> to vector<2x32xf32>
    %375 = arith.addf %373, %374 : vector<2x32xf32>
    %376 = arith.negf %375 : vector<2x32xf32>
    %377 = math.exp %376 : vector<2x32xf32>
    %cst_116 = arith.constant 1.000000e+00 : f32
    %378 = vector.broadcast %cst_116 : f32 to vector<2x32xf32>
    %379 = arith.addf %378, %377 : vector<2x32xf32>
    %380 = arith.divf %378, %379 : vector<2x32xf32>
    %381 = vector.extract_strided_slice %369 {offsets = [0, 32], sizes = [2, 32], strides = [1, 1]} : vector<2x96xf32> to vector<2x32xf32>
    %382 = vector.extract_strided_slice %364 {offsets = [0, 32], sizes = [2, 32], strides = [1, 1]} : vector<2x96xf32> to vector<2x32xf32>
    %383 = arith.addf %381, %382 : vector<2x32xf32>
    %384 = arith.negf %383 : vector<2x32xf32>
    %385 = math.exp %384 : vector<2x32xf32>
    %cst_117 = arith.constant 1.000000e+00 : f32
    %386 = vector.broadcast %cst_117 : f32 to vector<2x32xf32>
    %387 = arith.addf %386, %385 : vector<2x32xf32>
    %388 = arith.divf %386, %387 : vector<2x32xf32>
    %389 = vector.extract_strided_slice %369 {offsets = [0, 64], sizes = [2, 32], strides = [1, 1]} : vector<2x96xf32> to vector<2x32xf32>
    %390 = vector.extract_strided_slice %364 {offsets = [0, 64], sizes = [2, 32], strides = [1, 1]} : vector<2x96xf32> to vector<2x32xf32>
    %391 = arith.addf %390, %6 : vector<2x32xf32>
    %392 = arith.mulf %380, %391 : vector<2x32xf32>
    %393 = arith.addf %389, %392 : vector<2x32xf32>
    %394 = math.tanh %393 : vector<2x32xf32>
    %cst_118 = arith.constant 1.000000e+00 : f32
    %395 = vector.broadcast %cst_118 : f32 to vector<2x32xf32>
    %396 = arith.subf %395, %388 : vector<2x32xf32>
    %397 = arith.mulf %396, %394 : vector<2x32xf32>
    %398 = arith.mulf %388, %329 : vector<2x32xf32>
    %399 = arith.addf %397, %398 : vector<2x32xf32>
    %400 = vector.extract_strided_slice %372 {offsets = [0, 0], sizes = [2, 32], strides = [1, 1]} : vector<2x96xf32> to vector<2x32xf32>
    %401 = vector.extract_strided_slice %366 {offsets = [0, 0], sizes = [2, 32], strides = [1, 1]} : vector<2x96xf32> to vector<2x32xf32>
    %402 = arith.addf %400, %401 : vector<2x32xf32>
    %403 = arith.negf %402 : vector<2x32xf32>
    %404 = math.exp %403 : vector<2x32xf32>
    %cst_119 = arith.constant 1.000000e+00 : f32
    %405 = vector.broadcast %cst_119 : f32 to vector<2x32xf32>
    %406 = arith.addf %405, %404 : vector<2x32xf32>
    %407 = arith.divf %405, %406 : vector<2x32xf32>
    %408 = vector.extract_strided_slice %372 {offsets = [0, 32], sizes = [2, 32], strides = [1, 1]} : vector<2x96xf32> to vector<2x32xf32>
    %409 = vector.extract_strided_slice %366 {offsets = [0, 32], sizes = [2, 32], strides = [1, 1]} : vector<2x96xf32> to vector<2x32xf32>
    %410 = arith.addf %408, %409 : vector<2x32xf32>
    %411 = arith.negf %410 : vector<2x32xf32>
    %412 = math.exp %411 : vector<2x32xf32>
    %cst_120 = arith.constant 1.000000e+00 : f32
    %413 = vector.broadcast %cst_120 : f32 to vector<2x32xf32>
    %414 = arith.addf %413, %412 : vector<2x32xf32>
    %415 = arith.divf %413, %414 : vector<2x32xf32>
    %416 = vector.extract_strided_slice %372 {offsets = [0, 64], sizes = [2, 32], strides = [1, 1]} : vector<2x96xf32> to vector<2x32xf32>
    %417 = vector.extract_strided_slice %366 {offsets = [0, 64], sizes = [2, 32], strides = [1, 1]} : vector<2x96xf32> to vector<2x32xf32>
    %418 = arith.addf %417, %8 : vector<2x32xf32>
    %419 = arith.mulf %407, %418 : vector<2x32xf32>
    %420 = arith.addf %416, %419 : vector<2x32xf32>
    %421 = math.tanh %420 : vector<2x32xf32>
    %cst_121 = arith.constant 1.000000e+00 : f32
    %422 = vector.broadcast %cst_121 : f32 to vector<2x32xf32>
    %423 = arith.subf %422, %415 : vector<2x32xf32>
    %424 = arith.mulf %423, %421 : vector<2x32xf32>
    %425 = arith.mulf %415, %356 : vector<2x32xf32>
    %426 = arith.addf %424, %425 : vector<2x32xf32>
    %c0_122 = arith.constant 0 : index
    %c5_123 = arith.constant 5 : index
    %c0_124 = arith.constant 0 : index
    %427 = vector.load %arg7[%c0_122, %c5_123, %c0_124] : memref<2x8x32xf32, #tpu.memory_space<vmem>>, vector<2x1x32xf32>
    %428 = vector.shape_cast %427 : vector<2x1x32xf32> to vector<2x32xf32>
    %429 = vector.shape_cast %399 : vector<2x32xf32> to vector<2x1x32xf32>
    tpu.vector_store %arg7[%c0_122, %c5_123, %c0_124], %429 {strides = array<i32>} : memref<2x8x32xf32, #tpu.memory_space<vmem>>, vector<2x1x32xf32>,
    %c0_125 = arith.constant 0 : index
    %c2_126 = arith.constant 2 : index
    %c0_127 = arith.constant 0 : index
    %430 = vector.load %arg8[%c0_125, %c2_126, %c0_127] : memref<2x8x32xf32, #tpu.memory_space<vmem>>, vector<2x1x32xf32>
    %431 = vector.shape_cast %430 : vector<2x1x32xf32> to vector<2x32xf32>
    %432 = vector.shape_cast %426 : vector<2x32xf32> to vector<2x1x32xf32>
    tpu.vector_store %arg8[%c0_125, %c2_126, %c0_127], %432 {strides = array<i32>} : memref<2x8x32xf32, #tpu.memory_space<vmem>>, vector<2x1x32xf32>,
    %433 = arith.truncf %399 : vector<2x32xf32> to vector<2x32xbf16>
    %cst_128 = arith.constant dense<0.000000e+00> : vector<2x96xf32>
    %434 = tpu.matmul %433, %3, %cst_128 {dimension_numbers = #tpu.dot_dimension_numbers<[1], [0], [0], [1], [0, 0, 1, 1], [], []>} : vector<2x32xbf16>, vector<32x96xbf16>, vector<2x96xf32> -> vector<2x96xf32>
    %435 = arith.truncf %426 : vector<2x32xf32> to vector<2x32xbf16>
    %cst_129 = arith.constant dense<0.000000e+00> : vector<2x96xf32>
    %436 = tpu.matmul %435, %4, %cst_129 {dimension_numbers = #tpu.dot_dimension_numbers<[1], [0], [0], [1], [0, 0, 1, 1], [], []>} : vector<2x32xbf16>, vector<32x96xbf16>, vector<2x96xf32> -> vector<2x96xf32>
    %c6_130 = arith.constant 6 : index
    %c0_131 = arith.constant 0 : index
    %c0_132 = arith.constant 0 : index
    %437 = vector.load %arg1[%c6_130, %c0_131, %c0_132] : memref<8x2x96xbf16, #tpu.memory_space<vmem>>, vector<1x2x96xbf16>
    %438 = vector.shape_cast %437 : vector<1x2x96xbf16> to vector<2x96xbf16>
    %439 = arith.extf %438 : vector<2x96xbf16> to vector<2x96xf32>
    %c6_133 = arith.constant 6 : index
    %c0_134 = arith.constant 0 : index
    %c0_135 = arith.constant 0 : index
    %440 = vector.load %arg2[%c6_133, %c0_134, %c0_135] : memref<8x2x96xbf16, #tpu.memory_space<vmem>>, vector<1x2x96xbf16>
    %441 = vector.shape_cast %440 : vector<1x2x96xbf16> to vector<2x96xbf16>
    %442 = arith.extf %441 : vector<2x96xbf16> to vector<2x96xf32>
    %443 = vector.extract_strided_slice %439 {offsets = [0, 0], sizes = [2, 32], strides = [1, 1]} : vector<2x96xf32> to vector<2x32xf32>
    %444 = vector.extract_strided_slice %434 {offsets = [0, 0], sizes = [2, 32], strides = [1, 1]} : vector<2x96xf32> to vector<2x32xf32>
    %445 = arith.addf %443, %444 : vector<2x32xf32>
    %446 = arith.negf %445 : vector<2x32xf32>
    %447 = math.exp %446 : vector<2x32xf32>
    %cst_136 = arith.constant 1.000000e+00 : f32
    %448 = vector.broadcast %cst_136 : f32 to vector<2x32xf32>
    %449 = arith.addf %448, %447 : vector<2x32xf32>
    %450 = arith.divf %448, %449 : vector<2x32xf32>
    %451 = vector.extract_strided_slice %439 {offsets = [0, 32], sizes = [2, 32], strides = [1, 1]} : vector<2x96xf32> to vector<2x32xf32>
    %452 = vector.extract_strided_slice %434 {offsets = [0, 32], sizes = [2, 32], strides = [1, 1]} : vector<2x96xf32> to vector<2x32xf32>
    %453 = arith.addf %451, %452 : vector<2x32xf32>
    %454 = arith.negf %453 : vector<2x32xf32>
    %455 = math.exp %454 : vector<2x32xf32>
    %cst_137 = arith.constant 1.000000e+00 : f32
    %456 = vector.broadcast %cst_137 : f32 to vector<2x32xf32>
    %457 = arith.addf %456, %455 : vector<2x32xf32>
    %458 = arith.divf %456, %457 : vector<2x32xf32>
    %459 = vector.extract_strided_slice %439 {offsets = [0, 64], sizes = [2, 32], strides = [1, 1]} : vector<2x96xf32> to vector<2x32xf32>
    %460 = vector.extract_strided_slice %434 {offsets = [0, 64], sizes = [2, 32], strides = [1, 1]} : vector<2x96xf32> to vector<2x32xf32>
    %461 = arith.addf %460, %6 : vector<2x32xf32>
    %462 = arith.mulf %450, %461 : vector<2x32xf32>
    %463 = arith.addf %459, %462 : vector<2x32xf32>
    %464 = math.tanh %463 : vector<2x32xf32>
    %cst_138 = arith.constant 1.000000e+00 : f32
    %465 = vector.broadcast %cst_138 : f32 to vector<2x32xf32>
    %466 = arith.subf %465, %458 : vector<2x32xf32>
    %467 = arith.mulf %466, %464 : vector<2x32xf32>
    %468 = arith.mulf %458, %399 : vector<2x32xf32>
    %469 = arith.addf %467, %468 : vector<2x32xf32>
    %470 = vector.extract_strided_slice %442 {offsets = [0, 0], sizes = [2, 32], strides = [1, 1]} : vector<2x96xf32> to vector<2x32xf32>
    %471 = vector.extract_strided_slice %436 {offsets = [0, 0], sizes = [2, 32], strides = [1, 1]} : vector<2x96xf32> to vector<2x32xf32>
    %472 = arith.addf %470, %471 : vector<2x32xf32>
    %473 = arith.negf %472 : vector<2x32xf32>
    %474 = math.exp %473 : vector<2x32xf32>
    %cst_139 = arith.constant 1.000000e+00 : f32
    %475 = vector.broadcast %cst_139 : f32 to vector<2x32xf32>
    %476 = arith.addf %475, %474 : vector<2x32xf32>
    %477 = arith.divf %475, %476 : vector<2x32xf32>
    %478 = vector.extract_strided_slice %442 {offsets = [0, 32], sizes = [2, 32], strides = [1, 1]} : vector<2x96xf32> to vector<2x32xf32>
    %479 = vector.extract_strided_slice %436 {offsets = [0, 32], sizes = [2, 32], strides = [1, 1]} : vector<2x96xf32> to vector<2x32xf32>
    %480 = arith.addf %478, %479 : vector<2x32xf32>
    %481 = arith.negf %480 : vector<2x32xf32>
    %482 = math.exp %481 : vector<2x32xf32>
    %cst_140 = arith.constant 1.000000e+00 : f32
    %483 = vector.broadcast %cst_140 : f32 to vector<2x32xf32>
    %484 = arith.addf %483, %482 : vector<2x32xf32>
    %485 = arith.divf %483, %484 : vector<2x32xf32>
    %486 = vector.extract_strided_slice %442 {offsets = [0, 64], sizes = [2, 32], strides = [1, 1]} : vector<2x96xf32> to vector<2x32xf32>
    %487 = vector.extract_strided_slice %436 {offsets = [0, 64], sizes = [2, 32], strides = [1, 1]} : vector<2x96xf32> to vector<2x32xf32>
    %488 = arith.addf %487, %8 : vector<2x32xf32>
    %489 = arith.mulf %477, %488 : vector<2x32xf32>
    %490 = arith.addf %486, %489 : vector<2x32xf32>
    %491 = math.tanh %490 : vector<2x32xf32>
    %cst_141 = arith.constant 1.000000e+00 : f32
    %492 = vector.broadcast %cst_141 : f32 to vector<2x32xf32>
    %493 = arith.subf %492, %485 : vector<2x32xf32>
    %494 = arith.mulf %493, %491 : vector<2x32xf32>
    %495 = arith.mulf %485, %426 : vector<2x32xf32>
    %496 = arith.addf %494, %495 : vector<2x32xf32>
    %c0_142 = arith.constant 0 : index
    %c6_143 = arith.constant 6 : index
    %c0_144 = arith.constant 0 : index
    %497 = vector.load %arg7[%c0_142, %c6_143, %c0_144] : memref<2x8x32xf32, #tpu.memory_space<vmem>>, vector<2x1x32xf32>
    %498 = vector.shape_cast %497 : vector<2x1x32xf32> to vector<2x32xf32>
    %499 = vector.shape_cast %469 : vector<2x32xf32> to vector<2x1x32xf32>
    tpu.vector_store %arg7[%c0_142, %c6_143, %c0_144], %499 {strides = array<i32>} : memref<2x8x32xf32, #tpu.memory_space<vmem>>, vector<2x1x32xf32>,
    %c0_145 = arith.constant 0 : index
    %c1_146 = arith.constant 1 : index
    %c0_147 = arith.constant 0 : index
    %500 = vector.load %arg8[%c0_145, %c1_146, %c0_147] : memref<2x8x32xf32, #tpu.memory_space<vmem>>, vector<2x1x32xf32>
    %501 = vector.shape_cast %500 : vector<2x1x32xf32> to vector<2x32xf32>
    %502 = vector.shape_cast %496 : vector<2x32xf32> to vector<2x1x32xf32>
    tpu.vector_store %arg8[%c0_145, %c1_146, %c0_147], %502 {strides = array<i32>} : memref<2x8x32xf32, #tpu.memory_space<vmem>>, vector<2x1x32xf32>,
    %503 = arith.truncf %469 : vector<2x32xf32> to vector<2x32xbf16>
    %cst_148 = arith.constant dense<0.000000e+00> : vector<2x96xf32>
    %504 = tpu.matmul %503, %3, %cst_148 {dimension_numbers = #tpu.dot_dimension_numbers<[1], [0], [0], [1], [0, 0, 1, 1], [], []>} : vector<2x32xbf16>, vector<32x96xbf16>, vector<2x96xf32> -> vector<2x96xf32>
    %505 = arith.truncf %496 : vector<2x32xf32> to vector<2x32xbf16>
    %cst_149 = arith.constant dense<0.000000e+00> : vector<2x96xf32>
    %506 = tpu.matmul %505, %4, %cst_149 {dimension_numbers = #tpu.dot_dimension_numbers<[1], [0], [0], [1], [0, 0, 1, 1], [], []>} : vector<2x32xbf16>, vector<32x96xbf16>, vector<2x96xf32> -> vector<2x96xf32>
    %c7_150 = arith.constant 7 : index
    %c0_151 = arith.constant 0 : index
    %c0_152 = arith.constant 0 : index
    %507 = vector.load %arg1[%c7_150, %c0_151, %c0_152] : memref<8x2x96xbf16, #tpu.memory_space<vmem>>, vector<1x2x96xbf16>
    %508 = vector.shape_cast %507 : vector<1x2x96xbf16> to vector<2x96xbf16>
    %509 = arith.extf %508 : vector<2x96xbf16> to vector<2x96xf32>
    %c7_153 = arith.constant 7 : index
    %c0_154 = arith.constant 0 : index
    %c0_155 = arith.constant 0 : index
    %510 = vector.load %arg2[%c7_153, %c0_154, %c0_155] : memref<8x2x96xbf16, #tpu.memory_space<vmem>>, vector<1x2x96xbf16>
    %511 = vector.shape_cast %510 : vector<1x2x96xbf16> to vector<2x96xbf16>
    %512 = arith.extf %511 : vector<2x96xbf16> to vector<2x96xf32>
    %513 = vector.extract_strided_slice %509 {offsets = [0, 0], sizes = [2, 32], strides = [1, 1]} : vector<2x96xf32> to vector<2x32xf32>
    %514 = vector.extract_strided_slice %504 {offsets = [0, 0], sizes = [2, 32], strides = [1, 1]} : vector<2x96xf32> to vector<2x32xf32>
    %515 = arith.addf %513, %514 : vector<2x32xf32>
    %516 = arith.negf %515 : vector<2x32xf32>
    %517 = math.exp %516 : vector<2x32xf32>
    %cst_156 = arith.constant 1.000000e+00 : f32
    %518 = vector.broadcast %cst_156 : f32 to vector<2x32xf32>
    %519 = arith.addf %518, %517 : vector<2x32xf32>
    %520 = arith.divf %518, %519 : vector<2x32xf32>
    %521 = vector.extract_strided_slice %509 {offsets = [0, 32], sizes = [2, 32], strides = [1, 1]} : vector<2x96xf32> to vector<2x32xf32>
    %522 = vector.extract_strided_slice %504 {offsets = [0, 32], sizes = [2, 32], strides = [1, 1]} : vector<2x96xf32> to vector<2x32xf32>
    %523 = arith.addf %521, %522 : vector<2x32xf32>
    %524 = arith.negf %523 : vector<2x32xf32>
    %525 = math.exp %524 : vector<2x32xf32>
    %cst_157 = arith.constant 1.000000e+00 : f32
    %526 = vector.broadcast %cst_157 : f32 to vector<2x32xf32>
    %527 = arith.addf %526, %525 : vector<2x32xf32>
    %528 = arith.divf %526, %527 : vector<2x32xf32>
    %529 = vector.extract_strided_slice %509 {offsets = [0, 64], sizes = [2, 32], strides = [1, 1]} : vector<2x96xf32> to vector<2x32xf32>
    %530 = vector.extract_strided_slice %504 {offsets = [0, 64], sizes = [2, 32], strides = [1, 1]} : vector<2x96xf32> to vector<2x32xf32>
    %531 = arith.addf %530, %6 : vector<2x32xf32>
    %532 = arith.mulf %520, %531 : vector<2x32xf32>
    %533 = arith.addf %529, %532 : vector<2x32xf32>
    %534 = math.tanh %533 : vector<2x32xf32>
    %cst_158 = arith.constant 1.000000e+00 : f32
    %535 = vector.broadcast %cst_158 : f32 to vector<2x32xf32>
    %536 = arith.subf %535, %528 : vector<2x32xf32>
    %537 = arith.mulf %536, %534 : vector<2x32xf32>
    %538 = arith.mulf %528, %469 : vector<2x32xf32>
    %539 = arith.addf %537, %538 : vector<2x32xf32>
    %540 = vector.extract_strided_slice %512 {offsets = [0, 0], sizes = [2, 32], strides = [1, 1]} : vector<2x96xf32> to vector<2x32xf32>
    %541 = vector.extract_strided_slice %506 {offsets = [0, 0], sizes = [2, 32], strides = [1, 1]} : vector<2x96xf32> to vector<2x32xf32>
    %542 = arith.addf %540, %541 : vector<2x32xf32>
    %543 = arith.negf %542 : vector<2x32xf32>
    %544 = math.exp %543 : vector<2x32xf32>
    %cst_159 = arith.constant 1.000000e+00 : f32
    %545 = vector.broadcast %cst_159 : f32 to vector<2x32xf32>
    %546 = arith.addf %545, %544 : vector<2x32xf32>
    %547 = arith.divf %545, %546 : vector<2x32xf32>
    %548 = vector.extract_strided_slice %512 {offsets = [0, 32], sizes = [2, 32], strides = [1, 1]} : vector<2x96xf32> to vector<2x32xf32>
    %549 = vector.extract_strided_slice %506 {offsets = [0, 32], sizes = [2, 32], strides = [1, 1]} : vector<2x96xf32> to vector<2x32xf32>
    %550 = arith.addf %548, %549 : vector<2x32xf32>
    %551 = arith.negf %550 : vector<2x32xf32>
    %552 = math.exp %551 : vector<2x32xf32>
    %cst_160 = arith.constant 1.000000e+00 : f32
    %553 = vector.broadcast %cst_160 : f32 to vector<2x32xf32>
    %554 = arith.addf %553, %552 : vector<2x32xf32>
    %555 = arith.divf %553, %554 : vector<2x32xf32>
    %556 = vector.extract_strided_slice %512 {offsets = [0, 64], sizes = [2, 32], strides = [1, 1]} : vector<2x96xf32> to vector<2x32xf32>
    %557 = vector.extract_strided_slice %506 {offsets = [0, 64], sizes = [2, 32], strides = [1, 1]} : vector<2x96xf32> to vector<2x32xf32>
    %558 = arith.addf %557, %8 : vector<2x32xf32>
    %559 = arith.mulf %547, %558 : vector<2x32xf32>
    %560 = arith.addf %556, %559 : vector<2x32xf32>
    %561 = math.tanh %560 : vector<2x32xf32>
    %cst_161 = arith.constant 1.000000e+00 : f32
    %562 = vector.broadcast %cst_161 : f32 to vector<2x32xf32>
    %563 = arith.subf %562, %555 : vector<2x32xf32>
    %564 = arith.mulf %563, %561 : vector<2x32xf32>
    %565 = arith.mulf %555, %496 : vector<2x32xf32>
    %566 = arith.addf %564, %565 : vector<2x32xf32>
    %c0_162 = arith.constant 0 : index
    %c7_163 = arith.constant 7 : index
    %c0_164 = arith.constant 0 : index
    %567 = vector.load %arg7[%c0_162, %c7_163, %c0_164] : memref<2x8x32xf32, #tpu.memory_space<vmem>>, vector<2x1x32xf32>
    %568 = vector.shape_cast %567 : vector<2x1x32xf32> to vector<2x32xf32>
    %569 = vector.shape_cast %539 : vector<2x32xf32> to vector<2x1x32xf32>
    tpu.vector_store %arg7[%c0_162, %c7_163, %c0_164], %569 {strides = array<i32>} : memref<2x8x32xf32, #tpu.memory_space<vmem>>, vector<2x1x32xf32>,
    %c0_165 = arith.constant 0 : index
    %c0_166 = arith.constant 0 : index
    %c0_167 = arith.constant 0 : index
    %570 = vector.load %arg8[%c0_165, %c0_166, %c0_167] : memref<2x8x32xf32, #tpu.memory_space<vmem>>, vector<2x1x32xf32>
    %571 = vector.shape_cast %570 : vector<2x1x32xf32> to vector<2x32xf32>
    %572 = vector.shape_cast %566 : vector<2x32xf32> to vector<2x1x32xf32>
    tpu.vector_store %arg8[%c0_165, %c0_166, %c0_167], %572 {strides = array<i32>} : memref<2x8x32xf32, #tpu.memory_space<vmem>>, vector<2x1x32xf32>,
    %c0_168 = arith.constant 0 : index
    %c0_169 = arith.constant 0 : index
    %c0_170 = arith.constant 0 : index
    %573 = vector.load %arg10[%c0_168, %c0_169, %c0_170] : memref<2x2x32xf32, #tpu.memory_space<vmem>>, vector<1x2x32xf32>
    %574 = vector.shape_cast %573 : vector<1x2x32xf32> to vector<2x32xf32>
    %575 = vector.shape_cast %539 : vector<2x32xf32> to vector<1x2x32xf32>
    tpu.vector_store %arg10[%c0_168, %c0_169, %c0_170], %575 {strides = array<i32>} : memref<2x2x32xf32, #tpu.memory_space<vmem>>, vector<1x2x32xf32>,
    %c1_171 = arith.constant 1 : index
    %c0_172 = arith.constant 0 : index
    %c0_173 = arith.constant 0 : index
    %576 = vector.load %arg10[%c1_171, %c0_172, %c0_173] : memref<2x2x32xf32, #tpu.memory_space<vmem>>, vector<1x2x32xf32>
    %577 = vector.shape_cast %576 : vector<1x2x32xf32> to vector<2x32xf32>
    %578 = vector.shape_cast %566 : vector<2x32xf32> to vector<1x2x32xf32>
    tpu.vector_store %arg10[%c1_171, %c0_172, %c0_173], %578 {strides = array<i32>} : memref<2x2x32xf32, #tpu.memory_space<vmem>>, vector<1x2x32xf32>,
    %c0_i32_174 = arith.constant 0 : i32
    %579 = arith.cmpi eq, %arg0, %c0_i32_174 : i32
    %580 = arith.extui %579 : i1 to i32
    %c0_i32_175 = arith.constant 0 : i32
    %581 = arith.cmpi ne, %580, %c0_i32_175 : i32
    scf.if %581 {
      %c0_176 = arith.constant 0 : index
      %c0_177 = arith.constant 0 : index
      %c0_178 = arith.constant 0 : index
      %582 = vector.load %arg9[%c0_176, %c0_177, %c0_178] : memref<2x2x32xf32, #tpu.memory_space<vmem>>, vector<1x2x32xf32>
      %583 = vector.shape_cast %582 : vector<1x2x32xf32> to vector<2x32xf32>
      %584 = vector.shape_cast %539 : vector<2x32xf32> to vector<1x2x32xf32>
      tpu.vector_store %arg9[%c0_176, %c0_177, %c0_178], %584 {strides = array<i32>} : memref<2x2x32xf32, #tpu.memory_space<vmem>>, vector<1x2x32xf32>,
      %c1_179 = arith.constant 1 : index
      %c0_180 = arith.constant 0 : index
      %c0_181 = arith.constant 0 : index
      %585 = vector.load %arg9[%c1_179, %c0_180, %c0_181] : memref<2x2x32xf32, #tpu.memory_space<vmem>>, vector<1x2x32xf32>
      %586 = vector.shape_cast %585 : vector<1x2x32xf32> to vector<2x32xf32>
      %587 = vector.shape_cast %566 : vector<2x32xf32> to vector<1x2x32xf32>
      tpu.vector_store %arg9[%c1_179, %c0_180, %c0_181], %587 {strides = array<i32>} : memref<2x2x32xf32, #tpu.memory_space<vmem>>, vector<1x2x32xf32>,
    } else {
    }
    return
  }
  func.func @transform_0(%arg0: i32) -> (i32, i32, i32) {
    %c0_i32 = arith.constant 0 : i32
    %c0_i32_0 = arith.constant 0 : i32
    %c0_i32_1 = arith.constant 0 : i32
    return %arg0, %c0_i32, %c0_i32_0 : i32, i32, i32
  }
  func.func @transform_1(%arg0: i32) -> (i32, i32, i32) {
    %c0_i32 = arith.constant 0 : i32
    %c0_i32_0 = arith.constant 0 : i32
    %c0_i32_1 = arith.constant 0 : i32
    return %arg0, %c0_i32, %c0_i32_0 : i32, i32, i32
  }
  func.func @transform_2(%arg0: i32) -> (i32, i32, i32) {
    %c0_i32 = arith.constant 0 : i32
    %c0_i32_0 = arith.constant 0 : i32
    %c0_i32_1 = arith.constant 0 : i32
    %c0_i32_2 = arith.constant 0 : i32
    return %c0_i32, %c0_i32_0, %c0_i32_1 : i32, i32, i32
  }
  func.func @transform_3(%arg0: i32) -> (i32, i32) {
    %c0_i32 = arith.constant 0 : i32
    %c0_i32_0 = arith.constant 0 : i32
    %c0_i32_1 = arith.constant 0 : i32
    return %c0_i32, %c0_i32_0 : i32, i32
  }
  func.func @transform_4(%arg0: i32) -> (i32, i32) {
    %c0_i32 = arith.constant 0 : i32
    %c0_i32_0 = arith.constant 0 : i32
    %c0_i32_1 = arith.constant 0 : i32
    return %c0_i32, %c0_i32_0 : i32, i32
  }
  func.func @transform_5(%arg0: i32) -> (i32, i32, i32) {
    %c0_i32 = arith.constant 0 : i32
    %c0_i32_0 = arith.constant 0 : i32
    %c0_i32_1 = arith.constant 0 : i32
    %c0_i32_2 = arith.constant 0 : i32
    return %c0_i32, %c0_i32_0, %c0_i32_1 : i32, i32, i32
  }
  func.func @transform_6(%arg0: i32) -> (i32, i32, i32) {
    %c0_i32 = arith.constant 0 : i32
    %c0_i32_0 = arith.constant 0 : i32
    %c0_i32_1 = arith.constant 0 : i32
    return %c0_i32, %arg0, %c0_i32_0 : i32, i32, i32
  }
  func.func @transform_7(%arg0: i32) -> (i32, i32, i32) {
    %c0_i32 = arith.constant 0 : i32
    %0 = arith.subi %c0_i32, %arg0 : i32
    %c0_i32_0 = arith.constant 0 : i32
    %c0_i32_1 = arith.constant 0 : i32
    %c0_i32_2 = arith.constant 0 : i32
    return %c0_i32_0, %0, %c0_i32_1 : i32, i32, i32
  }
  func.func @transform_8(%arg0: i32) -> (i32, i32, i32) {
    %c0_i32 = arith.constant 0 : i32
    %c0_i32_0 = arith.constant 0 : i32
    %c0_i32_1 = arith.constant 0 : i32
    %c0_i32_2 = arith.constant 0 : i32
    return %c0_i32, %c0_i32_0, %c0_i32_1 : i32, i32, i32
  }
}

</mosaic_0001>

<llo_original>
// kernel: tpu_custom_call.1
$region0: #{tpu_custom_call.1}
  #allocation0 [shape = 'u32[]', space=smem, size = 0x4, offset = 0x4, fixed_abs, tag = 'smem constant byte address 0x4 - core index']
  #allocation1 [shape = 'u32[144,128]{1,0:T(1,128)}', space=vmem, size = 0x12000, scoped, tag = 'internal scratch']
  #allocation2 [shape = 'f32[2,2,32]{2,1,0:T(2,128)}', space=vmem, size = 0x800, scoped, tag = 'scratch operand']
  %s0 = inlined_call_operand.hbm [shape: bf16[8,2,96], index: 0, kind: input, shape index: {}]
  %s1 = inlined_call_operand.hbm [shape: bf16[8,2,96], index: 1, kind: input, shape index: {}]
  %s2 = inlined_call_operand.hbm [shape: f32[2,2,32], index: 2, kind: input, shape index: {}]
  %s3 = inlined_call_operand.hbm [shape: bf16[32,96], index: 3, kind: input, shape index: {}]
  %s4 = inlined_call_operand.hbm [shape: bf16[32,96], index: 4, kind: input, shape index: {}]
  %s5 = inlined_call_operand.vmem [shape: f32[2,2,32], index: 5, kind: input, shape index: {}]
  %s6 = inlined_call_operand.hbm [shape: f32[2,8,32], index: 6, kind: output, shape index: {0}]
  %s7 = inlined_call_operand.hbm [shape: f32[2,8,32], index: 7, kind: output, shape index: {1}]
  %s8 = inlined_call_operand.hbm [shape: f32[2,2,32], index: 8, kind: output, shape index: {2}]
  %9 = xla_tuple %s6, %s7, %s8
  %s10 = sld [smem:[#allocation0]]
  $region78: #{tpu_custom_call.1} parent=0
    _
  %s12 = ssub.s32 1, %s10
  %s13 = scalar_select 0, %s12, %s10
  $region1: #{tpu_custom_call.1} parent=0
    #allocation3 [shape = 'u8[4096]{0}', space=vmem, size = 0x1000, scoped, tag = 'input window, operand 0, single buffered']
    #allocation4 [shape = 's32[1]{0}', space=sflag, size = 0x4, scoped, tag = 'scoped memory for tpu_custom_call.1']
    #allocation5 [shape = 's32[1]{0}', space=sflag, size = 0x4, scoped, tag = 'scoped memory for tpu_custom_call.1']
    #allocation6 [shape = 'u8[4096]{0}', space=vmem, size = 0x1000, scoped, tag = 'input window, operand 1, single buffered']
    #allocation7 [shape = 's32[1]{0}', space=sflag, size = 0x4, scoped, tag = 'scoped memory for tpu_custom_call.1']
    #allocation8 [shape = 'u8[2048]{0}', space=vmem, size = 0x800, scoped, tag = 'input window, operand 2, single buffered']
    #allocation9 [shape = 'u8[8192]{0}', space=vmem, size = 0x2000, scoped, tag = 'input window, operand 3, single buffered']
    #allocation10 [shape = 's32[1]{0}', space=sflag, size = 0x4, scoped, tag = 'scoped memory for tpu_custom_call.1']
    #allocation11 [shape = 'u8[8192]{0}', space=vmem, size = 0x2000, scoped, tag = 'input window, operand 4, single buffered']
    #allocation12 [shape = 'u8[8192]{0}', space=vmem, size = 0x2000, scoped, tag = 'output window, operand 0, single buffered']
    #allocation13 [shape = 'u8[8192]{0}', space=vmem, size = 0x2000, scoped, tag = 'output window, operand 1, single buffered']
    #allocation14 [shape = 's32[1]{0}', space=sflag, size = 0x4, scoped, tag = 'scoped memory for tpu_custom_call.1']
    #allocation15 [shape = 'u8[2048]{0}', space=vmem, size = 0x800, scoped, tag = 'output window, operand 2, single buffered']
    %14 = vsyncpa [#allocation4], 0
    %15 = vsyncpa [#allocation7], 0
    %16 = vsyncpa [#allocation10], 0
    %17 = vsyncpa [#allocation5], 0
    %18 = vsyncpa [#allocation14], 0
    // Predicated region
    $region2: #{tpu_custom_call.1} parent=1 // pred_check
      _
    $region3: #{tpu_custom_call.1} parent=1 // pred_check_branch
      %20 = sbr.rel (0) target = $region5
    $region4: #{tpu_custom_call.1} parent=1 // pred_region
      %s22 = ssub.s32 128, 128
      %23 = vsyncadd [#allocation4], %s22
      %s24 = sshll.u32 [#allocation3], 4
      %s25 = int_to_ptr.vmem [resolvable:$true] %s24
      %30 = dma.hbm_to_vmem [thread:$0]  %s0, 128, %s25, [#allocation4], 16, 16, 1
    $region5: #{tpu_custom_call.1} parent=1 // pred_fallthru
      _
    // Predicated region
    $region6: #{tpu_custom_call.1} parent=1 // pred_check
      _
    $region7: #{tpu_custom_call.1} parent=1 // pred_check_branch
      %32 = sbr.rel (0) target = $region9
    $region8: #{tpu_custom_call.1} parent=1 // pred_region
      %s34 = ssub.s32 128, 128
      %35 = vsyncadd [#allocation7], %s34
      %s36 = sshll.u32 [#allocation6], 4
      %s37 = int_to_ptr.vmem [resolvable:$true] %s36
      %42 = dma.hbm_to_vmem [thread:$0]  %s1, 128, %s37, [#allocation7], 16, 16, 1
    $region9: #{tpu_custom_call.1} parent=1 // pred_fallthru
      _
    // Predicated region
    $region10: #{tpu_custom_call.1} parent=1 // pred_check
      _
    $region11: #{tpu_custom_call.1} parent=1 // pred_check_branch
      %44 = sbr.rel (0) target = $region13
    $region12: #{tpu_custom_call.1} parent=1 // pred_region
      %s46 = ssub.s32 64, 64
      %47 = vsyncadd [#allocation7], %s46
      %s48 = sshll.u32 [#allocation8], 4
      %s49 = int_to_ptr.vmem [resolvable:$true] %s48
      %54 = dma.hbm_to_vmem [thread:$0]  %s2, 64, %s49, [#allocation7], 32, 32, 2
    $region13: #{tpu_custom_call.1} parent=1 // pred_fallthru
      _
    // Predicated region
    $region14: #{tpu_custom_call.1} parent=1 // pred_check
      _
    $region15: #{tpu_custom_call.1} parent=1 // pred_check_branch
      %56 = sbr.rel (0) target = $region17
    $region16: #{tpu_custom_call.1} parent=1 // pred_region
      %s58 = ssub.s32 256, 256
      %59 = vsyncadd [#allocation10], %s58
      %s60 = sshll.u32 [#allocation9], 4
      %s61 = int_to_ptr.vmem [resolvable:$true] %s60
      %66 = dma.hbm_to_vmem [thread:$0]  %s3, 256, %s61, [#allocation10], 64, 64, 4
    $region17: #{tpu_custom_call.1} parent=1 // pred_fallthru
      _
    // Predicated region
    $region18: #{tpu_custom_call.1} parent=1 // pred_check
      _
    $region19: #{tpu_custom_call.1} parent=1 // pred_check_branch
      %68 = sbr.rel (0) target = $region21
    $region20: #{tpu_custom_call.1} parent=1 // pred_region
      %s70 = ssub.s32 256, 256
      %71 = vsyncadd [#allocation10], %s70
      %s72 = sshll.u32 [#allocation11], 4
      %s73 = int_to_ptr.vmem [resolvable:$true] %s72
      %78 = dma.hbm_to_vmem [thread:$0]  %s4, 256, %s73, [#allocation10], 64, 64, 4
    $region21: #{tpu_custom_call.1} parent=1 // pred_fallthru
      _
    // Predicated region
    $region22: #{tpu_custom_call.1} parent=1 // pred_check
      _
    $region23: #{tpu_custom_call.1} parent=1 // pred_check_branch
      %80 = sbr.rel (0) target = $region25
    $region24: #{tpu_custom_call.1} parent=1 // pred_region
      _
    $region25: #{tpu_custom_call.1} parent=1 // pred_fallthru
      _
    // Predicated region
    $region26: #{tpu_custom_call.1} parent=1 // pred_check
      _
    $region27: #{tpu_custom_call.1} parent=1 // pred_check_branch
      %82 = sbr.rel (0) target = $region29
    $region28: #{tpu_custom_call.1} parent=1 // pred_region
      %83 = dma.done [#allocation4], 128
    $region29: #{tpu_custom_call.1} parent=1 // pred_fallthru
      _
    // Predicated region
    $region30: #{tpu_custom_call.1} parent=1 // pred_check
      _
    $region31: #{tpu_custom_call.1} parent=1 // pred_check_branch
      %85 = sbr.rel (0) target = $region33
    $region32: #{tpu_custom_call.1} parent=1 // pred_region
      %86 = dma.done [#allocation7], 128
    $region33: #{tpu_custom_call.1} parent=1 // pred_fallthru
      _
    // Predicated region
    $region34: #{tpu_custom_call.1} parent=1 // pred_check
      _
    $region35: #{tpu_custom_call.1} parent=1 // pred_check_branch
      %88 = sbr.rel (0) target = $region37
    $region36: #{tpu_custom_call.1} parent=1 // pred_region
      %89 = dma.done [#allocation7], 64
    $region37: #{tpu_custom_call.1} parent=1 // pred_fallthru
      _
    // Predicated region
    $region38: #{tpu_custom_call.1} parent=1 // pred_check
      _
    $region39: #{tpu_custom_call.1} parent=1 // pred_check_branch
      %91 = sbr.rel (0) target = $region41
    $region40: #{tpu_custom_call.1} parent=1 // pred_region
      %92 = dma.done [#allocation10], 256
    $region41: #{tpu_custom_call.1} parent=1 // pred_fallthru
      _
    // Predicated region
    $region42: #{tpu_custom_call.1} parent=1 // pred_check
      _
    $region43: #{tpu_custom_call.1} parent=1 // pred_check_branch
      %94 = sbr.rel (0) target = $region45
    $region44: #{tpu_custom_call.1} parent=1 // pred_region
      %95 = dma.done [#allocation10], 256
    $region45: #{tpu_custom_call.1} parent=1 // pred_fallthru
      _
    %s96 = ssub.s32 0, 0
    %p98 = scmp.eq.s32.totalorder 0, 0
    // Predicated region
    $region46: #{tpu_custom_call.1} parent=1 // pred_check
      %p99 = pneg %p98
    $region47: #{tpu_custom_call.1} parent=1 // pred_check_branch
      %101 = sbr.rel (%p99) target = $region49
    $region48: #{tpu_custom_call.1} parent=1 // pred_region
      %v102 = vld [vmem:[#allocation8] sm:$0x3]
      %v103 = vld [vmem:[#allocation8 + $0x2] sm:$0x3]
      %vm104 = vcmask 254976
      %105 = vst.msk [vmem:[#allocation2] sm:$0x3] %vm104, %v102
      %106 = vst.msk [vmem:[#allocation2 + $0x2] sm:$0x3] %vm104, %v103
    $region49: #{tpu_custom_call.1} parent=1 // pred_fallthru
      _
    %v107 = vld [vmem:[#allocation9] sm:$0xf]
    %v108 = vld [vmem:[#allocation9 + $0x4] sm:$0xf]
    %v109 = vld [vmem:[#allocation9 + $0x8] sm:$0xf]
    %v110 = vld [vmem:[#allocation9 + $0xc] sm:$0xf]
    %v111 = vld [vmem:[#allocation11] sm:$0xf]
    %v112 = vld [vmem:[#allocation11 + $0x4] sm:$0xf]
    %v113 = vld [vmem:[#allocation11 + $0x8] sm:$0xf]
    %v114 = vld [vmem:[#allocation11 + $0xc] sm:$0xf]
    %v115 = vld [vmem:[%s5] sm:$0x3]
    %s116 = scalar_lea.vmem %s5, 2
    %v117 = vld [vmem:[%s116] sm:$0x3]
    %v118 = vld [vmem:[#allocation2] sm:$0x3]
    %s119 = scalar_lea.vmem [#allocation2], 2
    %v120 = vld [vmem:[%s119] sm:$0x3]
    %v121 = vpack.c.bf16 %v118, %v118
    %v126 = vunpack.c.l.b16 %v107
    %v127 = vunpack.c.l.b16 %v108
    %v128 = vunpack.c.l.b16 %v109
    %v129 = vunpack.c.l.b16 %v110
    %v130 = vpack.c.b16 %v127, %v126
    %v131 = vpack.c.b16 %v129, %v128
    %vm134 = vcmask 261120
    %v136 = vsel %vm134, %v121, 0
    %138 = vmatprep.subr.bf16.mxu0 0
    %139 = vmatpush1.bf16.msra.mxu0 0
    %140 = vmatprep.subr.bf16.mxu0 0
    %141 = vmatpush1.bf16.msra.mxu0 0
    %142 = vmatprep.subr.bf16.mxu0 0
    %143 = vmatpush1.bf16.msra.mxu0 0
    %144 = vmatprep.subr.bf16.mxu0 0
    %145 = vmatpush1.bf16.msra.mxu0 0
    %146 = vmatprep.subr.bf16.mxu0 0
    %147 = vmatpush1.bf16.msra.mxu0 0
    %148 = vmatprep.subr.bf16.mxu0 0
    %149 = vmatpush1.bf16.msra.mxu0 0
    %150 = vmatprep.subr.bf16.mxu0 0
    %151 = vmatpush1.bf16.msra.mxu0 %v131
    %152 = vmatprep.subr.bf16.mxu0 0
    %153 = vmatpush1.bf16.msra.mxu0 %v130
    %154 = vmatprep.subr.bf16.mxu0 0
    %155 = vmatpush2.bf16.msra.mxu0 0
    %156 = vmatprep.subr.bf16.mxu0 0
    %157 = vmatpush2.bf16.msra.mxu0 0
    %158 = vmatprep.subr.bf16.mxu0 0
    %159 = vmatpush2.bf16.msra.mxu0 0
    %160 = vmatprep.subr.bf16.mxu0 0
    %161 = vmatpush2.bf16.msra.mxu0 0
    %162 = vmatprep.subr.bf16.mxu0 0
    %163 = vmatpush2.bf16.msra.mxu0 0
    %164 = vmatprep.subr.bf16.mxu0 0
    %165 = vmatpush2.bf16.msra.mxu0 0
    %166 = vmatprep.subr.bf16.mxu0 0
    %167 = vmatpush2.bf16.msra.mxu0 0
    %168 = vmatprep.subr.bf16.mxu0 0
    %169 = vmatpush2.bf16.msra.mxu0 0
    %170 = vmatprep.mubr.bf16.mxu0 0
    %171 = vmatmul.mubr.bf16.gmra.mxu0 %v136
    %v172 = vpop.f32.mrf.mxu0
    %v173 = vadd.f32 0.0, %v172
    %v174 = vpop.f32.mrf.mxu0
    %v175 = vpop.f32.mrf.mxu0
    %v176 = vpop.f32.mrf.mxu0
    %177 = vdwg.mxu0
    %v178 = vpack.c.bf16 %v120, %v120
    %v183 = vunpack.c.l.b16 %v111
    %v184 = vunpack.c.l.b16 %v112
    %v185 = vunpack.c.l.b16 %v113
    %v186 = vunpack.c.l.b16 %v114
    %v187 = vpack.c.b16 %v184, %v183
    %v188 = vpack.c.b16 %v186, %v185
    %v192 = vsel %vm134, %v178, 0
    %194 = vmatprep.subr.bf16.mxu0 0
    %195 = vmatpush1.bf16.msra.mxu0 0
    %196 = vmatprep.subr.bf16.mxu0 0
    %197 = vmatpush1.bf16.msra.mxu0 0
    %198 = vmatprep.subr.bf16.mxu0 0
    %199 = vmatpush1.bf16.msra.mxu0 0
    %200 = vmatprep.subr.bf16.mxu0 0
    %201 = vmatpush1.bf16.msra.mxu0 0
    %202 = vmatprep.subr.bf16.mxu0 0
    %203 = vmatpush1.bf16.msra.mxu0 0
    %204 = vmatprep.subr.bf16.mxu0 0
    %205 = vmatpush1.bf16.msra.mxu0 0
    %206 = vmatprep.subr.bf16.mxu0 0
    %207 = vmatpush1.bf16.msra.mxu0 %v188
    %208 = vmatprep.subr.bf16.mxu0 0
    %209 = vmatpush1.bf16.msra.mxu0 %v187
    %210 = vmatprep.subr.bf16.mxu0 0
    %211 = vmatpush2.bf16.msra.mxu0 0
    %212 = vmatprep.subr.bf16.mxu0 0
    %213 = vmatpush2.bf16.msra.mxu0 0
    %214 = vmatprep.subr.bf16.mxu0 0
    %215 = vmatpush2.bf16.msra.mxu0 0
    %216 = vmatprep.subr.bf16.mxu0 0
    %217 = vmatpush2.bf16.msra.mxu0 0
    %218 = vmatprep.subr.bf16.mxu0 0
    %219 = vmatpush2.bf16.msra.mxu0 0
    %220 = vmatprep.subr.bf16.mxu0 0
    %221 = vmatpush2.bf16.msra.mxu0 0
    %222 = vmatprep.subr.bf16.mxu0 0
    %223 = vmatpush2.bf16.msra.mxu0 0
    %224 = vmatprep.subr.bf16.mxu0 0
    %225 = vmatpush2.bf16.msra.mxu0 0
    %226 = vmatprep.mubr.bf16.mxu0 0
    %227 = vmatmul.mubr.bf16.gmra.mxu0 %v192
    %v228 = vpop.f32.mrf.mxu0
    %v229 = vadd.f32 0.0, %v228
    %v230 = vpop.f32.mrf.mxu0
    %v231 = vpop.f32.mrf.mxu0
    %v232 = vpop.f32.mrf.mxu0
    %233 = vdwg.mxu0
    %v234 = vld [vmem:[#allocation3] sm:$0x1]
    %v235 = vunpack.c.l.bf16 %v234
    %v236 = vld [vmem:[#allocation6] sm:$0x1]
    %v237 = vunpack.c.l.bf16 %v236
    %v238 = vadd.f32 %v235, %v173
    %v239 = vxor.u32 %v238, 2147483648
    %v240 = vmul.f32 %v239, 1.442695
    %v241 = vpow.pop %v240
    %v242 = vadd.f32 %v241, 1.0
    %v243 = vrcp.pop %v242
    %v244 = vmul.f32 1.0, %v243
    %246 = vrot.lane.b32.xlu0 %v115, 64
    %v247 = vpop.permute.xlu0 %246
    %v249 = vadd.f32 %v173, %v247
    %v252 = vunpack.c.l.s4 1983009808
    %v253 = vunpack.c.0.s8 %v252
    %v254 = vlaneseq
    %v255 = vshrl.u32 %v254, 7
    %v256 = vsub.s32 %v253, %v255
    %v257 = vrot.slane %v249, %v256
    %258 = vrot.lane.b32.xlu0 %v257, 64
    %v259 = vpop.permute.xlu0 %258
    %v261 = vmul.f32 %v244, %v259
    %263 = vrot.lane.b32.xlu0 %v261, 64
    %v264 = vpop.permute.xlu0 %263
    %v266 = vadd.f32 %v235, %v264
    %v267 = vtanh.pop %v266
    %v268 = vsub.f32 1.0, %v244
    %270 = vrot.lane.b32.xlu0 %v267, 96
    %v271 = vpop.permute.xlu0 %270
    %v273 = vmul.f32 %v268, %v271
    %v276 = vunpack.c.l.s4 1983009808
    %v277 = vunpack.c.0.s8 %v276
    %v278 = vlaneseq
    %v279 = vshrl.u32 %v278, 7
    %v280 = vsub.s32 %v277, %v279
    %v281 = vrot.slane %v118, %v280
    %282 = vrot.lane.b32.xlu0 %v281, 32
    %v283 = vpop.permute.xlu0 %282
    %v285 = vmul.f32 %v244, %v283
    %v286 = vadd.f32 %v273, %v285
    %v287 = vadd.f32 %v237, %v229
    %v288 = vxor.u32 %v287, 2147483648
    %v289 = vmul.f32 %v288, 1.442695
    %v290 = vpow.pop %v289
    %v291 = vadd.f32 %v290, 1.0
    %v292 = vrcp.pop %v291
    %v293 = vmul.f32 1.0, %v292
    %295 = vrot.lane.b32.xlu0 %v117, 64
    %v296 = vpop.permute.xlu0 %295
    %v298 = vadd.f32 %v229, %v296
    %v301 = vunpack.c.l.s4 1983009808
    %v302 = vunpack.c.0.s8 %v301
    %v303 = vlaneseq
    %v304 = vshrl.u32 %v303, 7
    %v305 = vsub.s32 %v302, %v304
    %v306 = vrot.slane %v298, %v305
    %307 = vrot.lane.b32.xlu0 %v306, 64
    %v308 = vpop.permute.xlu0 %307
    %v310 = vmul.f32 %v293, %v308
    %312 = vrot.lane.b32.xlu0 %v310, 64
    %v313 = vpop.permute.xlu0 %312
    %v315 = vadd.f32 %v237, %v313
    %v316 = vtanh.pop %v315
    %v317 = vsub.f32 1.0, %v293
    %319 = vrot.lane.b32.xlu0 %v316, 96
    %v320 = vpop.permute.xlu0 %319
    %v322 = vmul.f32 %v317, %v320
    %v325 = vunpack.c.l.s4 1983009808
    %v326 = vunpack.c.0.s8 %v325
    %v327 = vlaneseq
    %v328 = vshrl.u32 %v327, 7
    %v329 = vsub.s32 %v326, %v328
    %v330 = vrot.slane %v120, %v329
    %331 = vrot.lane.b32.xlu0 %v330, 32
    %v332 = vpop.permute.xlu0 %331
    %v334 = vmul.f32 %v293, %v332
    %v335 = vadd.f32 %v322, %v334
    %v338 = vunpack.c.l.s4 1966171168
    %v339 = vunpack.c.0.s8 %v338
    %v340 = vlaneseq
    %v341 = vshrl.u32 %v340, 7
    %v342 = vsub.s32 %v339, %v341
    %v343 = vrot.slane %v286, %v342
    %v344 = vcombine.high %v343, %v343
    %v345 = vlaneseq
    %v346 = vshrl.u32 %v345, 7
    %v347 = vsub.s32 0, %v346
    %v348 = vrot.slane %v343, %v347
    %v349 = vlaneseq
    %v350 = vshrl.u32 %v349, 7
    %v351 = vsub.s32 0, %v350
    %v352 = vrot.slane %v344, %v351
    %353 = vrot.lane.b32.xlu0 %v348, 96
    %v354 = vpop.permute.xlu0 %353
    %355 = vrot.lane.b32.xlu0 %v352, 96
    %v356 = vpop.permute.xlu0 %355
    %vm359 = vcmask 253952
    %360 = vst.msk [vmem:[#allocation12] sm:$0x1] %vm359, %v354
    %361 = vst.msk [vmem:[#allocation12 + $0x8] sm:$0x1] %vm359, %v356
    %v364 = vunpack.c.l.s4 1966171168
    %v365 = vunpack.c.0.s8 %v364
    %v366 = vlaneseq
    %v367 = vshrl.u32 %v366, 7
    %v368 = vsub.s32 %v365, %v367
    %v369 = vrot.slane %v335, %v368
    %v370 = vcombine.high %v369, %v369
    %v371 = vlaneseq
    %v372 = vshrl.u32 %v371, 7
    %v373 = vsub.s32 0, %v372
    %v374 = vrot.slane %v369, %v373
    %v375 = vlaneseq
    %v376 = vshrl.u32 %v375, 7
    %v377 = vsub.s32 0, %v376
    %v378 = vrot.slane %v370, %v377
    %379 = vrot.lane.b32.xlu0 %v374, 96
    %v380 = vpop.permute.xlu0 %379
    %381 = vrot.lane.b32.xlu0 %v378, 96
    %v382 = vpop.permute.xlu0 %381
    %385 = vst.msk [vmem:[#allocation13 + $0x7] sm:$0x1] %vm359, %v380
    %386 = vst.msk [vmem:[#allocation13 + $0xf] sm:$0x1] %vm359, %v382
    %v387 = vpack.c.bf16 %v286, %v286
    %389 = vrot.lane.b32.xlu0 %v387, 96
    %v390 = vpop.permute.xlu0 %389
    %v392 = vsel %vm134, %v390, 0
    %394 = vmatprep.subr.bf16.mxu0 0
    %395 = vmatpush1.bf16.msra.mxu0 0
    %396 = vmatprep.subr.bf16.mxu0 0
    %397 = vmatpush1.bf16.msra.mxu0 0
    %398 = vmatprep.subr.bf16.mxu0 0
    %399 = vmatpush1.bf16.msra.mxu0 0
    %400 = vmatprep.subr.bf16.mxu0 0
    %401 = vmatpush1.bf16.msra.mxu0 0
    %402 = vmatprep.subr.bf16.mxu0 0
    %403 = vmatpush1.bf16.msra.mxu0 0
    %404 = vmatprep.subr.bf16.mxu0 0
    %405 = vmatpush1.bf16.msra.mxu0 0
    %406 = vmatprep.subr.bf16.mxu0 0
    %407 = vmatpush1.bf16.msra.mxu0 %v131
    %408 = vmatprep.subr.bf16.mxu0 0
    %409 = vmatpush1.bf16.msra.mxu0 %v130
    %410 = vmatprep.subr.bf16.mxu0 0
    %411 = vmatpush2.bf16.msra.mxu0 0
    %412 = vmatprep.subr.bf16.mxu0 0
    %413 = vmatpush2.bf16.msra.mxu0 0
    %414 = vmatprep.subr.bf16.mxu0 0
    %415 = vmatpush2.bf16.msra.mxu0 0
    %416 = vmatprep.subr.bf16.mxu0 0
    %417 = vmatpush2.bf16.msra.mxu0 0
    %418 = vmatprep.subr.bf16.mxu0 0
    %419 = vmatpush2.bf16.msra.mxu0 0
    %420 = vmatprep.subr.bf16.mxu0 0
    %421 = vmatpush2.bf16.msra.mxu0 0
    %422 = vmatprep.subr.bf16.mxu0 0
    %423 = vmatpush2.bf16.msra.mxu0 0
    %424 = vmatprep.subr.bf16.mxu0 0
    %425 = vmatpush2.bf16.msra.mxu0 0
    %426 = vmatprep.mubr.bf16.mxu0 0
    %427 = vmatmul.mubr.bf16.gmra.mxu0 %v392
    %v428 = vpop.f32.mrf.mxu0
    %v429 = vadd.f32 0.0, %v428
    %v430 = vpop.f32.mrf.mxu0
    %v431 = vpop.f32.mrf.mxu0
    %v432 = vpop.f32.mrf.mxu0
    %433 = vdwg.mxu0
    %v434 = vpack.c.bf16 %v335, %v335
    %436 = vrot.lane.b32.xlu0 %v434, 96
    %v437 = vpop.permute.xlu0 %436
    %v439 = vsel %vm134, %v437, 0
    %441 = vmatprep.subr.bf16.mxu0 0
    %442 = vmatpush1.bf16.msra.mxu0 0
    %443 = vmatprep.subr.bf16.mxu0 0
    %444 = vmatpush1.bf16.msra.mxu0 0
    %445 = vmatprep.subr.bf16.mxu0 0
    %446 = vmatpush1.bf16.msra.mxu0 0
    %447 = vmatprep.subr.bf16.mxu0 0
    %448 = vmatpush1.bf16.msra.mxu0 0
    %449 = vmatprep.subr.bf16.mxu0 0
    %450 = vmatpush1.bf16.msra.mxu0 0
    %451 = vmatprep.subr.bf16.mxu0 0
    %452 = vmatpush1.bf16.msra.mxu0 0
    %453 = vmatprep.subr.bf16.mxu0 0
    %454 = vmatpush1.bf16.msra.mxu0 %v188
    %455 = vmatprep.subr.bf16.mxu0 0
    %456 = vmatpush1.bf16.msra.mxu0 %v187
    %457 = vmatprep.subr.bf16.mxu0 0
    %458 = vmatpush2.bf16.msra.mxu0 0
    %459 = vmatprep.subr.bf16.mxu0 0
    %460 = vmatpush2.bf16.msra.mxu0 0
    %461 = vmatprep.subr.bf16.mxu0 0
    %462 = vmatpush2.bf16.msra.mxu0 0
    %463 = vmatprep.subr.bf16.mxu0 0
    %464 = vmatpush2.bf16.msra.mxu0 0
    %465 = vmatprep.subr.bf16.mxu0 0
    %466 = vmatpush2.bf16.msra.mxu0 0
    %467 = vmatprep.subr.bf16.mxu0 0
    %468 = vmatpush2.bf16.msra.mxu0 0
    %469 = vmatprep.subr.bf16.mxu0 0
    %470 = vmatpush2.bf16.msra.mxu0 0
    %471 = vmatprep.subr.bf16.mxu0 0
    %472 = vmatpush2.bf16.msra.mxu0 0
    %473 = vmatprep.mubr.bf16.mxu0 0
    %474 = vmatmul.mubr.bf16.gmra.mxu0 %v439
    %v475 = vpop.f32.mrf.mxu0
    %v476 = vadd.f32 0.0, %v475
    %v477 = vpop.f32.mrf.mxu0
    %v478 = vpop.f32.mrf.mxu0
    %v479 = vpop.f32.mrf.mxu0
    %480 = vdwg.mxu0
    %s481 = scalar_lea.vmem [#allocation3], 1
    %v482 = vld [vmem:[%s481] sm:$0x1]
    %v483 = vunpack.c.l.bf16 %v482
    %s484 = scalar_lea.vmem [#allocation6], 1
    %v485 = vld [vmem:[%s484] sm:$0x1]
    %v486 = vunpack.c.l.bf16 %v485
    %v487 = vadd.f32 %v483, %v429
    %v488 = vxor.u32 %v487, 2147483648
    %v489 = vmul.f32 %v488, 1.442695
    %v490 = vpow.pop %v489
    %v491 = vadd.f32 %v490, 1.0
    %v492 = vrcp.pop %v491
    %v493 = vmul.f32 1.0, %v492
    %v494 = vadd.f32 %v429, %v247
    %v497 = vunpack.c.l.s4 1983009808
    %v498 = vunpack.c.0.s8 %v497
    %v499 = vlaneseq
    %v500 = vshrl.u32 %v499, 7
    %v501 = vsub.s32 %v498, %v500
    %v502 = vrot.slane %v494, %v501
    %503 = vrot.lane.b32.xlu0 %v502, 64
    %v504 = vpop.permute.xlu0 %503
    %v506 = vmul.f32 %v493, %v504
    %508 = vrot.lane.b32.xlu0 %v506, 64
    %v509 = vpop.permute.xlu0 %508
    %v511 = vadd.f32 %v483, %v509
    %v512 = vtanh.pop %v511
    %v513 = vsub.f32 1.0, %v493
    %515 = vrot.lane.b32.xlu0 %v512, 96
    %v516 = vpop.permute.xlu0 %515
    %v518 = vmul.f32 %v513, %v516
    %v519 = vmul.f32 %v493, %v286
    %v520 = vadd.f32 %v518, %v519
    %v521 = vadd.f32 %v486, %v476
    %v522 = vxor.u32 %v521, 2147483648
    %v523 = vmul.f32 %v522, 1.442695
    %v524 = vpow.pop %v523
    %v525 = vadd.f32 %v524, 1.0
    %v526 = vrcp.pop %v525
    %v527 = vmul.f32 1.0, %v526
    %v528 = vadd.f32 %v476, %v296
    %v531 = vunpack.c.l.s4 1983009808
    %v532 = vunpack.c.0.s8 %v531
    %v533 = vlaneseq
    %v534 = vshrl.u32 %v533, 7
    %v535 = vsub.s32 %v532, %v534
    %v536 = vrot.slane %v528, %v535
    %537 = vrot.lane.b32.xlu0 %v536, 64
    %v538 = vpop.permute.xlu0 %537
    %v540 = vmul.f32 %v527, %v538
    %542 = vrot.lane.b32.xlu0 %v540, 64
    %v543 = vpop.permute.xlu0 %542
    %v545 = vadd.f32 %v486, %v543
    %v546 = vtanh.pop %v545
    %v547 = vsub.f32 1.0, %v527
    %549 = vrot.lane.b32.xlu0 %v546, 96
    %v550 = vpop.permute.xlu0 %549
    %v552 = vmul.f32 %v547, %v550
    %v553 = vmul.f32 %v527, %v335
    %v554 = vadd.f32 %v552, %v553
    %v557 = vunpack.c.l.s4 1966171168
    %v558 = vunpack.c.0.s8 %v557
    %v559 = vlaneseq
    %v560 = vshrl.u32 %v559, 7
    %v561 = vsub.s32 %v558, %v560
    %v562 = vrot.slane %v520, %v561
    %v563 = vcombine.high %v562, %v562
    %v564 = vlaneseq
    %v565 = vshrl.u32 %v564, 7
    %v566 = vsub.s32 0, %v565
    %v567 = vrot.slane %v562, %v566
    %v568 = vlaneseq
    %v569 = vshrl.u32 %v568, 7
    %v570 = vsub.s32 0, %v569
    %v571 = vrot.slane %v563, %v570
    %572 = vrot.lane.b32.xlu0 %v567, 96
    %v573 = vpop.permute.xlu0 %572
    %574 = vrot.lane.b32.xlu0 %v571, 96
    %v575 = vpop.permute.xlu0 %574
    %578 = vst.msk [vmem:[#allocation12 + $0x1] sm:$0x1] %vm359, %v573
    %579 = vst.msk [vmem:[#allocation12 + $0x9] sm:$0x1] %vm359, %v575
    %v582 = vunpack.c.l.s4 1966171168
    %v583 = vunpack.c.0.s8 %v582
    %v584 = vlaneseq
    %v585 = vshrl.u32 %v584, 7
    %v586 = vsub.s32 %v583, %v585
    %v587 = vrot.slane %v554, %v586
    %v588 = vcombine.high %v587, %v587
    %v589 = vlaneseq
    %v590 = vshrl.u32 %v589, 7
    %v591 = vsub.s32 0, %v590
    %v592 = vrot.slane %v587, %v591
    %v593 = vlaneseq
    %v594 = vshrl.u32 %v593, 7
    %v595 = vsub.s32 0, %v594
    %v596 = vrot.slane %v588, %v595
    %597 = vrot.lane.b32.xlu0 %v592, 96
    %v598 = vpop.permute.xlu0 %597
    %599 = vrot.lane.b32.xlu0 %v596, 96
    %v600 = vpop.permute.xlu0 %599
    %603 = vst.msk [vmem:[#allocation13 + $0x6] sm:$0x1] %vm359, %v598
    %604 = vst.msk [vmem:[#allocation13 + $0xe] sm:$0x1] %vm359, %v600
    %v605 = vpack.c.bf16 %v520, %v520
    %607 = vrot.lane.b32.xlu0 %v605, 96
    %v608 = vpop.permute.xlu0 %607
    %v610 = vsel %vm134, %v608, 0
    %612 = vmatprep.subr.bf16.mxu0 0
    %613 = vmatpush1.bf16.msra.mxu0 0
    %614 = vmatprep.subr.bf16.mxu0 0
    %615 = vmatpush1.bf16.msra.mxu0 0
    %616 = vmatprep.subr.bf16.mxu0 0
    %617 = vmatpush1.bf16.msra.mxu0 0
    %618 = vmatprep.subr.bf16.mxu0 0
    %619 = vmatpush1.bf16.msra.mxu0 0
    %620 = vmatprep.subr.bf16.mxu0 0
    %621 = vmatpush1.bf16.msra.mxu0 0
    %622 = vmatprep.subr.bf16.mxu0 0
    %623 = vmatpush1.bf16.msra.mxu0 0
    %624 = vmatprep.subr.bf16.mxu0 0
    %625 = vmatpush1.bf16.msra.mxu0 %v131
    %626 = vmatprep.subr.bf16.mxu0 0
    %627 = vmatpush1.bf16.msra.mxu0 %v130
    %628 = vmatprep.subr.bf16.mxu0 0
    %629 = vmatpush2.bf16.msra.mxu0 0
    %630 = vmatprep.subr.bf16.mxu0 0
    %631 = vmatpush2.bf16.msra.mxu0 0
    %632 = vmatprep.subr.bf16.mxu0 0
    %633 = vmatpush2.bf16.msra.mxu0 0
    %634 = vmatprep.subr.bf16.mxu0 0
    %635 = vmatpush2.bf16.msra.mxu0 0
    %636 = vmatprep.subr.bf16.mxu0 0
    %637 = vmatpush2.bf16.msra.mxu0 0
    %638 = vmatprep.subr.bf16.mxu0 0
    %639 = vmatpush2.bf16.msra.mxu0 0
    %640 = vmatprep.subr.bf16.mxu0 0
    %641 = vmatpush2.bf16.msra.mxu0 0
    %642 = vmatprep.subr.bf16.mxu0 0
    %643 = vmatpush2.bf16.msra.mxu0 0
    %644 = vmatprep.mubr.bf16.mxu0 0
    %645 = vmatmul.mubr.bf16.gmra.mxu0 %v610
    %v646 = vpop.f32.mrf.mxu0
    %v647 = vadd.f32 0.0, %v646
    %v648 = vpop.f32.mrf.mxu0
    %v649 = vpop.f32.mrf.mxu0
    %v650 = vpop.f32.mrf.mxu0
    %651 = vdwg.mxu0
    %v652 = vpack.c.bf16 %v554, %v554
    %654 = vrot.lane.b32.xlu0 %v652, 96
    %v655 = vpop.permute.xlu0 %654
    %v657 = vsel %vm134, %v655, 0
    %659 = vmatprep.subr.bf16.mxu0 0
    %660 = vmatpush1.bf16.msra.mxu0 0
    %661 = vmatprep.subr.bf16.mxu0 0
    %662 = vmatpush1.bf16.msra.mxu0 0
    %663 = vmatprep.subr.bf16.mxu0 0
    %664 = vmatpush1.bf16.msra.mxu0 0
    %665 = vmatprep.subr.bf16.mxu0 0
    %666 = vmatpush1.bf16.msra.mxu0 0
    %667 = vmatprep.subr.bf16.mxu0 0
    %668 = vmatpush1.bf16.msra.mxu0 0
    %669 = vmatprep.subr.bf16.mxu0 0
    %670 = vmatpush1.bf16.msra.mxu0 0
    %671 = vmatprep.subr.bf16.mxu0 0
    %672 = vmatpush1.bf16.msra.mxu0 %v188
    %673 = vmatprep.subr.bf16.mxu0 0
    %674 = vmatpush1.bf16.msra.mxu0 %v187
    %675 = vmatprep.subr.bf16.mxu0 0
    %676 = vmatpush2.bf16.msra.mxu0 0
    %677 = vmatprep.subr.bf16.mxu0 0
    %678 = vmatpush2.bf16.msra.mxu0 0
    %679 = vmatprep.subr.bf16.mxu0 0
    %680 = vmatpush2.bf16.msra.mxu0 0
    %681 = vmatprep.subr.bf16.mxu0 0
    %682 = vmatpush2.bf16.msra.mxu0 0
    %683 = vmatprep.subr.bf16.mxu0 0
    %684 = vmatpush2.bf16.msra.mxu0 0
    %685 = vmatprep.subr.bf16.mxu0 0
    %686 = vmatpush2.bf16.msra.mxu0 0
    %687 = vmatprep.subr.bf16.mxu0 0
    %688 = vmatpush2.bf16.msra.mxu0 0
    %689 = vmatprep.subr.bf16.mxu0 0
    %690 = vmatpush2.bf16.msra.mxu0 0
    %691 = vmatprep.mubr.bf16.mxu0 0
    %692 = vmatmul.mubr.bf16.gmra.mxu0 %v657
    %v693 = vpop.f32.mrf.mxu0
    %v694 = vadd.f32 0.0, %v693
    %v695 = vpop.f32.mrf.mxu0
    %v696 = vpop.f32.mrf.mxu0
    %v697 = vpop.f32.mrf.mxu0
    %698 = vdwg.mxu0
    %s699 = scalar_lea.vmem [#allocation3], 2
    %v700 = vld [vmem:[%s699] sm:$0x1]
    %v701 = vunpack.c.l.bf16 %v700
    %s702 = scalar_lea.vmem [#allocation6], 2
    %v703 = vld [vmem:[%s702] sm:$0x1]
    %v704 = vunpack.c.l.bf16 %v703
    %v705 = vadd.f32 %v701, %v647
    %v706 = vxor.u32 %v705, 2147483648
    %v707 = vmul.f32 %v706, 1.442695
    %v708 = vpow.pop %v707
    %v709 = vadd.f32 %v708, 1.0
    %v710 = vrcp.pop %v709
    %v711 = vmul.f32 1.0, %v710
    %v712 = vadd.f32 %v647, %v247
    %v715 = vunpack.c.l.s4 1983009808
    %v716 = vunpack.c.0.s8 %v715
    %v717 = vlaneseq
    %v718 = vshrl.u32 %v717, 7
    %v719 = vsub.s32 %v716, %v718
    %v720 = vrot.slane %v712, %v719
    %721 = vrot.lane.b32.xlu0 %v720, 64
    %v722 = vpop.permute.xlu0 %721
    %v724 = vmul.f32 %v711, %v722
    %726 = vrot.lane.b32.xlu0 %v724, 64
    %v727 = vpop.permute.xlu0 %726
    %v729 = vadd.f32 %v701, %v727
    %v730 = vtanh.pop %v729
    %v731 = vsub.f32 1.0, %v711
    %733 = vrot.lane.b32.xlu0 %v730, 96
    %v734 = vpop.permute.xlu0 %733
    %v736 = vmul.f32 %v731, %v734
    %v737 = vmul.f32 %v711, %v520
    %v738 = vadd.f32 %v736, %v737
    %v739 = vadd.f32 %v704, %v694
    %v740 = vxor.u32 %v739, 2147483648
    %v741 = vmul.f32 %v740, 1.442695
    %v742 = vpow.pop %v741
    %v743 = vadd.f32 %v742, 1.0
    %v744 = vrcp.pop %v743
    %v745 = vmul.f32 1.0, %v744
    %v746 = vadd.f32 %v694, %v296
    %v749 = vunpack.c.l.s4 1983009808
    %v750 = vunpack.c.0.s8 %v749
    %v751 = vlaneseq
    %v752 = vshrl.u32 %v751, 7
    %v753 = vsub.s32 %v750, %v752
    %v754 = vrot.slane %v746, %v753
    %755 = vrot.lane.b32.xlu0 %v754, 64
    %v756 = vpop.permute.xlu0 %755
    %v758 = vmul.f32 %v745, %v756
    %760 = vrot.lane.b32.xlu0 %v758, 64
    %v761 = vpop.permute.xlu0 %760
    %v763 = vadd.f32 %v704, %v761
    %v764 = vtanh.pop %v763
    %v765 = vsub.f32 1.0, %v745
    %767 = vrot.lane.b32.xlu0 %v764, 96
    %v768 = vpop.permute.xlu0 %767
    %v770 = vmul.f32 %v765, %v768
    %v771 = vmul.f32 %v745, %v554
    %v772 = vadd.f32 %v770, %v771
    %v775 = vunpack.c.l.s4 1966171168
    %v776 = vunpack.c.0.s8 %v775
    %v777 = vlaneseq
    %v778 = vshrl.u32 %v777, 7
    %v779 = vsub.s32 %v776, %v778
    %v780 = vrot.slane %v738, %v779
    %v781 = vcombine.high %v780, %v780
    %v782 = vlaneseq
    %v783 = vshrl.u32 %v782, 7
    %v784 = vsub.s32 0, %v783
    %v785 = vrot.slane %v780, %v784
    %v786 = vlaneseq
    %v787 = vshrl.u32 %v786, 7
    %v788 = vsub.s32 0, %v787
    %v789 = vrot.slane %v781, %v788
    %790 = vrot.lane.b32.xlu0 %v785, 96
    %v791 = vpop.permute.xlu0 %790
    %792 = vrot.lane.b32.xlu0 %v789, 96
    %v793 = vpop.permute.xlu0 %792
    %796 = vst.msk [vmem:[#allocation12 + $0x2] sm:$0x1] %vm359, %v791
    %797 = vst.msk [vmem:[#allocation12 + $0xa] sm:$0x1] %vm359, %v793
    %v800 = vunpack.c.l.s4 1966171168
    %v801 = vunpack.c.0.s8 %v800
    %v802 = vlaneseq
    %v803 = vshrl.u32 %v802, 7
    %v804 = vsub.s32 %v801, %v803
    %v805 = vrot.slane %v772, %v804
    %v806 = vcombine.high %v805, %v805
    %v807 = vlaneseq
    %v808 = vshrl.u32 %v807, 7
    %v809 = vsub.s32 0, %v808
    %v810 = vrot.slane %v805, %v809
    %v811 = vlaneseq
    %v812 = vshrl.u32 %v811, 7
    %v813 = vsub.s32 0, %v812
    %v814 = vrot.slane %v806, %v813
    %815 = vrot.lane.b32.xlu0 %v810, 96
    %v816 = vpop.permute.xlu0 %815
    %817 = vrot.lane.b32.xlu0 %v814, 96
    %v818 = vpop.permute.xlu0 %817
    %821 = vst.msk [vmem:[#allocation13 + $0x5] sm:$0x1] %vm359, %v816
    %822 = vst.msk [vmem:[#allocation13 + $0xd] sm:$0x1] %vm359, %v818
    %v823 = vpack.c.bf16 %v738, %v738
    %825 = vrot.lane.b32.xlu0 %v823, 96
    %v826 = vpop.permute.xlu0 %825
    %v828 = vsel %vm134, %v826, 0
    %830 = vmatprep.subr.bf16.mxu0 0
    %831 = vmatpush1.bf16.msra.mxu0 0
    %832 = vmatprep.subr.bf16.mxu0 0
    %833 = vmatpush1.bf16.msra.mxu0 0
    %834 = vmatprep.subr.bf16.mxu0 0
    %835 = vmatpush1.bf16.msra.mxu0 0
    %836 = vmatprep.subr.bf16.mxu0 0
    %837 = vmatpush1.bf16.msra.mxu0 0
    %838 = vmatprep.subr.bf16.mxu0 0
    %839 = vmatpush1.bf16.msra.mxu0 0
    %840 = vmatprep.subr.bf16.mxu0 0
    %841 = vmatpush1.bf16.msra.mxu0 0
    %842 = vmatprep.subr.bf16.mxu0 0
    %843 = vmatpush1.bf16.msra.mxu0 %v131
    %844 = vmatprep.subr.bf16.mxu0 0
    %845 = vmatpush1.bf16.msra.mxu0 %v130
    %846 = vmatprep.subr.bf16.mxu0 0
    %847 = vmatpush2.bf16.msra.mxu0 0
    %848 = vmatprep.subr.bf16.mxu0 0
    %849 = vmatpush2.bf16.msra.mxu0 0
    %850 = vmatprep.subr.bf16.mxu0 0
    %851 = vmatpush2.bf16.msra.mxu0 0
    %852 = vmatprep.subr.bf16.mxu0 0
    %853 = vmatpush2.bf16.msra.mxu0 0
    %854 = vmatprep.subr.bf16.mxu0 0
    %855 = vmatpush2.bf16.msra.mxu0 0
    %856 = vmatprep.subr.bf16.mxu0 0
    %857 = vmatpush2.bf16.msra.mxu0 0
    %858 = vmatprep.subr.bf16.mxu0 0
    %859 = vmatpush2.bf16.msra.mxu0 0
    %860 = vmatprep.subr.bf16.mxu0 0
    %861 = vmatpush2.bf16.msra.mxu0 0
    %862 = vmatprep.mubr.bf16.mxu0 0
    %863 = vmatmul.mubr.bf16.gmra.mxu0 %v828
    %v864 = vpop.f32.mrf.mxu0
    %v865 = vadd.f32 0.0, %v864
    %v866 = vpop.f32.mrf.mxu0
    %v867 = vpop.f32.mrf.mxu0
    %v868 = vpop.f32.mrf.mxu0
    %869 = vdwg.mxu0
    %v870 = vpack.c.bf16 %v772, %v772
    %872 = vrot.lane.b32.xlu0 %v870, 96
    %v873 = vpop.permute.xlu0 %872
    %v875 = vsel %vm134, %v873, 0
    %877 = vmatprep.subr.bf16.mxu0 0
    %878 = vmatpush1.bf16.msra.mxu0 0
    %879 = vmatprep.subr.bf16.mxu0 0
    %880 = vmatpush1.bf16.msra.mxu0 0
    %881 = vmatprep.subr.bf16.mxu0 0
    %882 = vmatpush1.bf16.msra.mxu0 0
    %883 = vmatprep.subr.bf16.mxu0 0
    %884 = vmatpush1.bf16.msra.mxu0 0
    %885 = vmatprep.subr.bf16.mxu0 0
    %886 = vmatpush1.bf16.msra.mxu0 0
    %887 = vmatprep.subr.bf16.mxu0 0
    %888 = vmatpush1.bf16.msra.mxu0 0
    %889 = vmatprep.subr.bf16.mxu0 0
    %890 = vmatpush1.bf16.msra.mxu0 %v188
    %891 = vmatprep.subr.bf16.mxu0 0
    %892 = vmatpush1.bf16.msra.mxu0 %v187
    %893 = vmatprep.subr.bf16.mxu0 0
    %894 = vmatpush2.bf16.msra.mxu0 0
    %895 = vmatprep.subr.bf16.mxu0 0
    %896 = vmatpush2.bf16.msra.mxu0 0
    %897 = vmatprep.subr.bf16.mxu0 0
    %898 = vmatpush2.bf16.msra.mxu0 0
    %899 = vmatprep.subr.bf16.mxu0 0
    %900 = vmatpush2.bf16.msra.mxu0 0
    %901 = vmatprep.subr.bf16.mxu0 0
    %902 = vmatpush2.bf16.msra.mxu0 0
    %903 = vmatprep.subr.bf16.mxu0 0
    %904 = vmatpush2.bf16.msra.mxu0 0
    %905 = vmatprep.subr.bf16.mxu0 0
    %906 = vmatpush2.bf16.msra.mxu0 0
    %907 = vmatprep.subr.bf16.mxu0 0
    %908 = vmatpush2.bf16.msra.mxu0 0
    %909 = vmatprep.mubr.bf16.mxu0 0
    %910 = vmatmul.mubr.bf16.gmra.mxu0 %v875
    %v911 = vpop.f32.mrf.mxu0
    %v912 = vadd.f32 0.0, %v911
    %v913 = vpop.f32.mrf.mxu0
    %v914 = vpop.f32.mrf.mxu0
    %v915 = vpop.f32.mrf.mxu0
    %916 = vdwg.mxu0
    %s917 = scalar_lea.vmem [#allocation3], 3
    %v918 = vld [vmem:[%s917] sm:$0x1]
    %v919 = vunpack.c.l.bf16 %v918
    %s920 = scalar_lea.vmem [#allocation6], 3
    %v921 = vld [vmem:[%s920] sm:$0x1]
    %v922 = vunpack.c.l.bf16 %v921
    %v923 = vadd.f32 %v919, %v865
    %v924 = vxor.u32 %v923, 2147483648
    %v925 = vmul.f32 %v924, 1.442695
    %v926 = vpow.pop %v925
    %v927 = vadd.f32 %v926, 1.0
    %v928 = vrcp.pop %v927
    %v929 = vmul.f32 1.0, %v928
    %v930 = vadd.f32 %v865, %v247
    %v933 = vunpack.c.l.s4 1983009808
    %v934 = vunpack.c.0.s8 %v933
    %v935 = vlaneseq
    %v936 = vshrl.u32 %v935, 7
    %v937 = vsub.s32 %v934, %v936
    %v938 = vrot.slane %v930, %v937
    %939 = vrot.lane.b32.xlu0 %v938, 64
    %v940 = vpop.permute.xlu0 %939
    %v942 = vmul.f32 %v929, %v940
    %944 = vrot.lane.b32.xlu0 %v942, 64
    %v945 = vpop.permute.xlu0 %944
    %v947 = vadd.f32 %v919, %v945
    %v948 = vtanh.pop %v947
    %v949 = vsub.f32 1.0, %v929
    %951 = vrot.lane.b32.xlu0 %v948, 96
    %v952 = vpop.permute.xlu0 %951
    %v954 = vmul.f32 %v949, %v952
    %v955 = vmul.f32 %v929, %v738
    %v956 = vadd.f32 %v954, %v955
    %v957 = vadd.f32 %v922, %v912
    %v958 = vxor.u32 %v957, 2147483648
    %v959 = vmul.f32 %v958, 1.442695
    %v960 = vpow.pop %v959
    %v961 = vadd.f32 %v960, 1.0
    %v962 = vrcp.pop %v961
    %v963 = vmul.f32 1.0, %v962
    %v964 = vadd.f32 %v912, %v296
    %v967 = vunpack.c.l.s4 1983009808
    %v968 = vunpack.c.0.s8 %v967
    %v969 = vlaneseq
    %v970 = vshrl.u32 %v969, 7
    %v971 = vsub.s32 %v968, %v970
    %v972 = vrot.slane %v964, %v971
    %973 = vrot.lane.b32.xlu0 %v972, 64
    %v974 = vpop.permute.xlu0 %973
    %v976 = vmul.f32 %v963, %v974
    %978 = vrot.lane.b32.xlu0 %v976, 64
    %v979 = vpop.permute.xlu0 %978
    %v981 = vadd.f32 %v922, %v979
    %v982 = vtanh.pop %v981
    %v983 = vsub.f32 1.0, %v963
    %985 = vrot.lane.b32.xlu0 %v982, 96
    %v986 = vpop.permute.xlu0 %985
    %v988 = vmul.f32 %v983, %v986
    %v989 = vmul.f32 %v963, %v772
    %v990 = vadd.f32 %v988, %v989
    %v993 = vunpack.c.l.s4 1966171168
    %v994 = vunpack.c.0.s8 %v993
    %v995 = vlaneseq
    %v996 = vshrl.u32 %v995, 7
    %v997 = vsub.s32 %v994, %v996
    %v998 = vrot.slane %v956, %v997
    %v999 = vcombine.high %v998, %v998
    %v1000 = vlaneseq
    %v1001 = vshrl.u32 %v1000, 7
    %v1002 = vsub.s32 0, %v1001
    %v1003 = vrot.slane %v998, %v1002
    %v1004 = vlaneseq
    %v1005 = vshrl.u32 %v1004, 7
    %v1006 = vsub.s32 0, %v1005
    %v1007 = vrot.slane %v999, %v1006
    %1008 = vrot.lane.b32.xlu0 %v1003, 96
    %v1009 = vpop.permute.xlu0 %1008
    %1010 = vrot.lane.b32.xlu0 %v1007, 96
    %v1011 = vpop.permute.xlu0 %1010
    %1014 = vst.msk [vmem:[#allocation12 + $0x3] sm:$0x1] %vm359, %v1009
    %1015 = vst.msk [vmem:[#allocation12 + $0xb] sm:$0x1] %vm359, %v1011
    %v1018 = vunpack.c.l.s4 1966171168
    %v1019 = vunpack.c.0.s8 %v1018
    %v1020 = vlaneseq
    %v1021 = vshrl.u32 %v1020, 7
    %v1022 = vsub.s32 %v1019, %v1021
    %v1023 = vrot.slane %v990, %v1022
    %v1024 = vcombine.high %v1023, %v1023
    %v1025 = vlaneseq
    %v1026 = vshrl.u32 %v1025, 7
    %v1027 = vsub.s32 0, %v1026
    %v1028 = vrot.slane %v1023, %v1027
    %v1029 = vlaneseq
    %v1030 = vshrl.u32 %v1029, 7
    %v1031 = vsub.s32 0, %v1030
    %v1032 = vrot.slane %v1024, %v1031
    %1033 = vrot.lane.b32.xlu0 %v1028, 96
    %v1034 = vpop.permute.xlu0 %1033
    %1035 = vrot.lane.b32.xlu0 %v1032, 96
    %v1036 = vpop.permute.xlu0 %1035
    %1039 = vst.msk [vmem:[#allocation13 + $0x4] sm:$0x1] %vm359, %v1034
    %1040 = vst.msk [vmem:[#allocation13 + $0xc] sm:$0x1] %vm359, %v1036
    %v1041 = vpack.c.bf16 %v956, %v956
    %1043 = vrot.lane.b32.xlu0 %v1041, 96
    %v1044 = vpop.permute.xlu0 %1043
    %v1046 = vsel %vm134, %v1044, 0
    %1048 = vmatprep.subr.bf16.mxu0 0
    %1049 = vmatpush1.bf16.msra.mxu0 0
    %1050 = vmatprep.subr.bf16.mxu0 0
    %1051 = vmatpush1.bf16.msra.mxu0 0
    %1052 = vmatprep.subr.bf16.mxu0 0
    %1053 = vmatpush1.bf16.msra.mxu0 0
    %1054 = vmatprep.subr.bf16.mxu0 0
    %1055 = vmatpush1.bf16.msra.mxu0 0
    %1056 = vmatprep.subr.bf16.mxu0 0
    %1057 = vmatpush1.bf16.msra.mxu0 0
    %1058 = vmatprep.subr.bf16.mxu0 0
    %1059 = vmatpush1.bf16.msra.mxu0 0
    %1060 = vmatprep.subr.bf16.mxu0 0
    %1061 = vmatpush1.bf16.msra.mxu0 %v131
    %1062 = vmatprep.subr.bf16.mxu0 0
    %1063 = vmatpush1.bf16.msra.mxu0 %v130
    %1064 = vmatprep.subr.bf16.mxu0 0
    %1065 = vmatpush2.bf16.msra.mxu0 0
    %1066 = vmatprep.subr.bf16.mxu0 0
    %1067 = vmatpush2.bf16.msra.mxu0 0
    %1068 = vmatprep.subr.bf16.mxu0 0
    %1069 = vmatpush2.bf16.msra.mxu0 0
    %1070 = vmatprep.subr.bf16.mxu0 0
    %1071 = vmatpush2.bf16.msra.mxu0 0
    %1072 = vmatprep.subr.bf16.mxu0 0
    %1073 = vmatpush2.bf16.msra.mxu0 0
    %1074 = vmatprep.subr.bf16.mxu0 0
    %1075 = vmatpush2.bf16.msra.mxu0 0
    %1076 = vmatprep.subr.bf16.mxu0 0
    %1077 = vmatpush2.bf16.msra.mxu0 0
    %1078 = vmatprep.subr.bf16.mxu0 0
    %1079 = vmatpush2.bf16.msra.mxu0 0
    %1080 = vmatprep.mubr.bf16.mxu0 0
    %1081 = vmatmul.mubr.bf16.gmra.mxu0 %v1046
    %v1082 = vpop.f32.mrf.mxu0
    %v1083 = vadd.f32 0.0, %v1082
    %v1084 = vpop.f32.mrf.mxu0
    %v1085 = vpop.f32.mrf.mxu0
    %v1086 = vpop.f32.mrf.mxu0
    %1087 = vdwg.mxu0
    %v1088 = vpack.c.bf16 %v990, %v990
    %1090 = vrot.lane.b32.xlu0 %v1088, 96
    %v1091 = vpop.permute.xlu0 %1090
    %v1093 = vsel %vm134, %v1091, 0
    %1095 = vmatprep.subr.bf16.mxu0 0
    %1096 = vmatpush1.bf16.msra.mxu0 0
    %1097 = vmatprep.subr.bf16.mxu0 0
    %1098 = vmatpush1.bf16.msra.mxu0 0
    %1099 = vmatprep.subr.bf16.mxu0 0
    %1100 = vmatpush1.bf16.msra.mxu0 0
    %1101 = vmatprep.subr.bf16.mxu0 0
    %1102 = vmatpush1.bf16.msra.mxu0 0
    %1103 = vmatprep.subr.bf16.mxu0 0
    %1104 = vmatpush1.bf16.msra.mxu0 0
    %1105 = vmatprep.subr.bf16.mxu0 0
    %1106 = vmatpush1.bf16.msra.mxu0 0
    %1107 = vmatprep.subr.bf16.mxu0 0
    %1108 = vmatpush1.bf16.msra.mxu0 %v188
    %1109 = vmatprep.subr.bf16.mxu0 0
    %1110 = vmatpush1.bf16.msra.mxu0 %v187
    %1111 = vmatprep.subr.bf16.mxu0 0
    %1112 = vmatpush2.bf16.msra.mxu0 0
    %1113 = vmatprep.subr.bf16.mxu0 0
    %1114 = vmatpush2.bf16.msra.mxu0 0
    %1115 = vmatprep.subr.bf16.mxu0 0
    %1116 = vmatpush2.bf16.msra.mxu0 0
    %1117 = vmatprep.subr.bf16.mxu0 0
    %1118 = vmatpush2.bf16.msra.mxu0 0
    %1119 = vmatprep.subr.bf16.mxu0 0
    %1120 = vmatpush2.bf16.msra.mxu0 0
    %1121 = vmatprep.subr.bf16.mxu0 0
    %1122 = vmatpush2.bf16.msra.mxu0 0
    %1123 = vmatprep.subr.bf16.mxu0 0
    %1124 = vmatpush2.bf16.msra.mxu0 0
    %1125 = vmatprep.subr.bf16.mxu0 0
    %1126 = vmatpush2.bf16.msra.mxu0 0
    %1127 = vmatprep.mubr.bf16.mxu0 0
    %1128 = vmatmul.mubr.bf16.gmra.mxu0 %v1093
    %v1129 = vpop.f32.mrf.mxu0
    %v1130 = vadd.f32 0.0, %v1129
    %v1131 = vpop.f32.mrf.mxu0
    %v1132 = vpop.f32.mrf.mxu0
    %v1133 = vpop.f32.mrf.mxu0
    %1134 = vdwg.mxu0
    %s1135 = scalar_lea.vmem [#allocation3], 4
    %v1136 = vld [vmem:[%s1135] sm:$0x1]
    %v1137 = vunpack.c.l.bf16 %v1136
    %s1138 = scalar_lea.vmem [#allocation6], 4
    %v1139 = vld [vmem:[%s1138] sm:$0x1]
    %v1140 = vunpack.c.l.bf16 %v1139
    %v1141 = vadd.f32 %v1137, %v1083
    %v1142 = vxor.u32 %v1141, 2147483648
    %v1143 = vmul.f32 %v1142, 1.442695
    %v1144 = vpow.pop %v1143
    %v1145 = vadd.f32 %v1144, 1.0
    %v1146 = vrcp.pop %v1145
    %v1147 = vmul.f32 1.0, %v1146
    %v1148 = vadd.f32 %v1083, %v247
    %v1151 = vunpack.c.l.s4 1983009808
    %v1152 = vunpack.c.0.s8 %v1151
    %v1153 = vlaneseq
    %v1154 = vshrl.u32 %v1153, 7
    %v1155 = vsub.s32 %v1152, %v1154
    %v1156 = vrot.slane %v1148, %v1155
    %1157 = vrot.lane.b32.xlu0 %v1156, 64
    %v1158 = vpop.permute.xlu0 %1157
    %v1160 = vmul.f32 %v1147, %v1158
    %1162 = vrot.lane.b32.xlu0 %v1160, 64
    %v1163 = vpop.permute.xlu0 %1162
    %v1165 = vadd.f32 %v1137, %v1163
    %v1166 = vtanh.pop %v1165
    %v1167 = vsub.f32 1.0, %v1147
    %1169 = vrot.lane.b32.xlu0 %v1166, 96
    %v1170 = vpop.permute.xlu0 %1169
    %v1172 = vmul.f32 %v1167, %v1170
    %v1173 = vmul.f32 %v1147, %v956
    %v1174 = vadd.f32 %v1172, %v1173
    %v1175 = vadd.f32 %v1140, %v1130
    %v1176 = vxor.u32 %v1175, 2147483648
    %v1177 = vmul.f32 %v1176, 1.442695
    %v1178 = vpow.pop %v1177
    %v1179 = vadd.f32 %v1178, 1.0
    %v1180 = vrcp.pop %v1179
    %v1181 = vmul.f32 1.0, %v1180
    %v1182 = vadd.f32 %v1130, %v296
    %v1185 = vunpack.c.l.s4 1983009808
    %v1186 = vunpack.c.0.s8 %v1185
    %v1187 = vlaneseq
    %v1188 = vshrl.u32 %v1187, 7
    %v1189 = vsub.s32 %v1186, %v1188
    %v1190 = vrot.slane %v1182, %v1189
    %1191 = vrot.lane.b32.xlu0 %v1190, 64
    %v1192 = vpop.permute.xlu0 %1191
    %v1194 = vmul.f32 %v1181, %v1192
    %1196 = vrot.lane.b32.xlu0 %v1194, 64
    %v1197 = vpop.permute.xlu0 %1196
    %v1199 = vadd.f32 %v1140, %v1197
    %v1200 = vtanh.pop %v1199
    %v1201 = vsub.f32 1.0, %v1181
    %1203 = vrot.lane.b32.xlu0 %v1200, 96
    %v1204 = vpop.permute.xlu0 %1203
    %v1206 = vmul.f32 %v1201, %v1204
    %v1207 = vmul.f32 %v1181, %v990
    %v1208 = vadd.f32 %v1206, %v1207
    %v1211 = vunpack.c.l.s4 1966171168
    %v1212 = vunpack.c.0.s8 %v1211
    %v1213 = vlaneseq
    %v1214 = vshrl.u32 %v1213, 7
    %v1215 = vsub.s32 %v1212, %v1214
    %v1216 = vrot.slane %v1174, %v1215
    %v1217 = vcombine.high %v1216, %v1216
    %v1218 = vlaneseq
    %v1219 = vshrl.u32 %v1218, 7
    %v1220 = vsub.s32 0, %v1219
    %v1221 = vrot.slane %v1216, %v1220
    %v1222 = vlaneseq
    %v1223 = vshrl.u32 %v1222, 7
    %v1224 = vsub.s32 0, %v1223
    %v1225 = vrot.slane %v1217, %v1224
    %1226 = vrot.lane.b32.xlu0 %v1221, 96
    %v1227 = vpop.permute.xlu0 %1226
    %1228 = vrot.lane.b32.xlu0 %v1225, 96
    %v1229 = vpop.permute.xlu0 %1228
    %1232 = vst.msk [vmem:[#allocation12 + $0x4] sm:$0x1] %vm359, %v1227
    %1233 = vst.msk [vmem:[#allocation12 + $0xc] sm:$0x1] %vm359, %v1229
    %v1236 = vunpack.c.l.s4 1966171168
    %v1237 = vunpack.c.0.s8 %v1236
    %v1238 = vlaneseq
    %v1239 = vshrl.u32 %v1238, 7
    %v1240 = vsub.s32 %v1237, %v1239
    %v1241 = vrot.slane %v1208, %v1240
    %v1242 = vcombine.high %v1241, %v1241
    %v1243 = vlaneseq
    %v1244 = vshrl.u32 %v1243, 7
    %v1245 = vsub.s32 0, %v1244
    %v1246 = vrot.slane %v1241, %v1245
    %v1247 = vlaneseq
    %v1248 = vshrl.u32 %v1247, 7
    %v1249 = vsub.s32 0, %v1248
    %v1250 = vrot.slane %v1242, %v1249
    %1251 = vrot.lane.b32.xlu0 %v1246, 96
    %v1252 = vpop.permute.xlu0 %1251
    %1253 = vrot.lane.b32.xlu0 %v1250, 96
    %v1254 = vpop.permute.xlu0 %1253
    %1257 = vst.msk [vmem:[#allocation13 + $0x3] sm:$0x1] %vm359, %v1252
    %1258 = vst.msk [vmem:[#allocation13 + $0xb] sm:$0x1] %vm359, %v1254
    %v1259 = vpack.c.bf16 %v1174, %v1174
    %1261 = vrot.lane.b32.xlu0 %v1259, 96
    %v1262 = vpop.permute.xlu0 %1261
    %v1264 = vsel %vm134, %v1262, 0
    %1266 = vmatprep.subr.bf16.mxu0 0
    %1267 = vmatpush1.bf16.msra.mxu0 0
    %1268 = vmatprep.subr.bf16.mxu0 0
    %1269 = vmatpush1.bf16.msra.mxu0 0
    %1270 = vmatprep.subr.bf16.mxu0 0
    %1271 = vmatpush1.bf16.msra.mxu0 0
    %1272 = vmatprep.subr.bf16.mxu0 0
    %1273 = vmatpush1.bf16.msra.mxu0 0
    %1274 = vmatprep.subr.bf16.mxu0 0
    %1275 = vmatpush1.bf16.msra.mxu0 0
    %1276 = vmatprep.subr.bf16.mxu0 0
    %1277 = vmatpush1.bf16.msra.mxu0 0
    %1278 = vmatprep.subr.bf16.mxu0 0
    %1279 = vmatpush1.bf16.msra.mxu0 %v131
    %1280 = vmatprep.subr.bf16.mxu0 0
    %1281 = vmatpush1.bf16.msra.mxu0 %v130
    %1282 = vmatprep.subr.bf16.mxu0 0
    %1283 = vmatpush2.bf16.msra.mxu0 0
    %1284 = vmatprep.subr.bf16.mxu0 0
    %1285 = vmatpush2.bf16.msra.mxu0 0
    %1286 = vmatprep.subr.bf16.mxu0 0
    %1287 = vmatpush2.bf16.msra.mxu0 0
    %1288 = vmatprep.subr.bf16.mxu0 0
    %1289 = vmatpush2.bf16.msra.mxu0 0
    %1290 = vmatprep.subr.bf16.mxu0 0
    %1291 = vmatpush2.bf16.msra.mxu0 0
    %1292 = vmatprep.subr.bf16.mxu0 0
    %1293 = vmatpush2.bf16.msra.mxu0 0
    %1294 = vmatprep.subr.bf16.mxu0 0
    %1295 = vmatpush2.bf16.msra.mxu0 0
    %1296 = vmatprep.subr.bf16.mxu0 0
    %1297 = vmatpush2.bf16.msra.mxu0 0
    %1298 = vmatprep.mubr.bf16.mxu0 0
    %1299 = vmatmul.mubr.bf16.gmra.mxu0 %v1264
    %v1300 = vpop.f32.mrf.mxu0
    %v1301 = vadd.f32 0.0, %v1300
    %v1302 = vpop.f32.mrf.mxu0
    %v1303 = vpop.f32.mrf.mxu0
    %v1304 = vpop.f32.mrf.mxu0
    %1305 = vdwg.mxu0
    %v1306 = vpack.c.bf16 %v1208, %v1208
    %1308 = vrot.lane.b32.xlu0 %v1306, 96
    %v1309 = vpop.permute.xlu0 %1308
    %v1311 = vsel %vm134, %v1309, 0
    %1313 = vmatprep.subr.bf16.mxu0 0
    %1314 = vmatpush1.bf16.msra.mxu0 0
    %1315 = vmatprep.subr.bf16.mxu0 0
    %1316 = vmatpush1.bf16.msra.mxu0 0
    %1317 = vmatprep.subr.bf16.mxu0 0
    %1318 = vmatpush1.bf16.msra.mxu0 0
    %1319 = vmatprep.subr.bf16.mxu0 0
    %1320 = vmatpush1.bf16.msra.mxu0 0
    %1321 = vmatprep.subr.bf16.mxu0 0
    %1322 = vmatpush1.bf16.msra.mxu0 0
    %1323 = vmatprep.subr.bf16.mxu0 0
    %1324 = vmatpush1.bf16.msra.mxu0 0
    %1325 = vmatprep.subr.bf16.mxu0 0
    %1326 = vmatpush1.bf16.msra.mxu0 %v188
    %1327 = vmatprep.subr.bf16.mxu0 0
    %1328 = vmatpush1.bf16.msra.mxu0 %v187
    %1329 = vmatprep.subr.bf16.mxu0 0
    %1330 = vmatpush2.bf16.msra.mxu0 0
    %1331 = vmatprep.subr.bf16.mxu0 0
    %1332 = vmatpush2.bf16.msra.mxu0 0
    %1333 = vmatprep.subr.bf16.mxu0 0
    %1334 = vmatpush2.bf16.msra.mxu0 0
    %1335 = vmatprep.subr.bf16.mxu0 0
    %1336 = vmatpush2.bf16.msra.mxu0 0
    %1337 = vmatprep.subr.bf16.mxu0 0
    %1338 = vmatpush2.bf16.msra.mxu0 0
    %1339 = vmatprep.subr.bf16.mxu0 0
    %1340 = vmatpush2.bf16.msra.mxu0 0
    %1341 = vmatprep.subr.bf16.mxu0 0
    %1342 = vmatpush2.bf16.msra.mxu0 0
    %1343 = vmatprep.subr.bf16.mxu0 0
    %1344 = vmatpush2.bf16.msra.mxu0 0
    %1345 = vmatprep.mubr.bf16.mxu0 0
    %1346 = vmatmul.mubr.bf16.gmra.mxu0 %v1311
    %v1347 = vpop.f32.mrf.mxu0
    %v1348 = vadd.f32 0.0, %v1347
    %v1349 = vpop.f32.mrf.mxu0
    %v1350 = vpop.f32.mrf.mxu0
    %v1351 = vpop.f32.mrf.mxu0
    %1352 = vdwg.mxu0
    %s1353 = scalar_lea.vmem [#allocation3], 5
    %v1354 = vld [vmem:[%s1353] sm:$0x1]
    %v1355 = vunpack.c.l.bf16 %v1354
    %s1356 = scalar_lea.vmem [#allocation6], 5
    %v1357 = vld [vmem:[%s1356] sm:$0x1]
    %v1358 = vunpack.c.l.bf16 %v1357
    %v1359 = vadd.f32 %v1355, %v1301
    %v1360 = vxor.u32 %v1359, 2147483648
    %v1361 = vmul.f32 %v1360, 1.442695
    %v1362 = vpow.pop %v1361
    %v1363 = vadd.f32 %v1362, 1.0
    %v1364 = vrcp.pop %v1363
    %v1365 = vmul.f32 1.0, %v1364
    %v1366 = vadd.f32 %v1301, %v247
    %v1369 = vunpack.c.l.s4 1983009808
    %v1370 = vunpack.c.0.s8 %v1369
    %v1371 = vlaneseq
    %v1372 = vshrl.u32 %v1371, 7
    %v1373 = vsub.s32 %v1370, %v1372
    %v1374 = vrot.slane %v1366, %v1373
    %1375 = vrot.lane.b32.xlu0 %v1374, 64
    %v1376 = vpop.permute.xlu0 %1375
    %v1378 = vmul.f32 %v1365, %v1376
    %1380 = vrot.lane.b32.xlu0 %v1378, 64
    %v1381 = vpop.permute.xlu0 %1380
    %v1383 = vadd.f32 %v1355, %v1381
    %v1384 = vtanh.pop %v1383
    %v1385 = vsub.f32 1.0, %v1365
    %1387 = vrot.lane.b32.xlu0 %v1384, 96
    %v1388 = vpop.permute.xlu0 %1387
    %v1390 = vmul.f32 %v1385, %v1388
    %v1391 = vmul.f32 %v1365, %v1174
    %v1392 = vadd.f32 %v1390, %v1391
    %v1393 = vadd.f32 %v1358, %v1348
    %v1394 = vxor.u32 %v1393, 2147483648
    %v1395 = vmul.f32 %v1394, 1.442695
    %v1396 = vpow.pop %v1395
    %v1397 = vadd.f32 %v1396, 1.0
    %v1398 = vrcp.pop %v1397
    %v1399 = vmul.f32 1.0, %v1398
    %v1400 = vadd.f32 %v1348, %v296
    %v1403 = vunpack.c.l.s4 1983009808
    %v1404 = vunpack.c.0.s8 %v1403
    %v1405 = vlaneseq
    %v1406 = vshrl.u32 %v1405, 7
    %v1407 = vsub.s32 %v1404, %v1406
    %v1408 = vrot.slane %v1400, %v1407
    %1409 = vrot.lane.b32.xlu0 %v1408, 64
    %v1410 = vpop.permute.xlu0 %1409
    %v1412 = vmul.f32 %v1399, %v1410
    %1414 = vrot.lane.b32.xlu0 %v1412, 64
    %v1415 = vpop.permute.xlu0 %1414
    %v1417 = vadd.f32 %v1358, %v1415
    %v1418 = vtanh.pop %v1417
    %v1419 = vsub.f32 1.0, %v1399
    %1421 = vrot.lane.b32.xlu0 %v1418, 96
    %v1422 = vpop.permute.xlu0 %1421
    %v1424 = vmul.f32 %v1419, %v1422
    %v1425 = vmul.f32 %v1399, %v1208
    %v1426 = vadd.f32 %v1424, %v1425
    %v1429 = vunpack.c.l.s4 1966171168
    %v1430 = vunpack.c.0.s8 %v1429
    %v1431 = vlaneseq
    %v1432 = vshrl.u32 %v1431, 7
    %v1433 = vsub.s32 %v1430, %v1432
    %v1434 = vrot.slane %v1392, %v1433
    %v1435 = vcombine.high %v1434, %v1434
    %v1436 = vlaneseq
    %v1437 = vshrl.u32 %v1436, 7
    %v1438 = vsub.s32 0, %v1437
    %v1439 = vrot.slane %v1434, %v1438
    %v1440 = vlaneseq
    %v1441 = vshrl.u32 %v1440, 7
    %v1442 = vsub.s32 0, %v1441
    %v1443 = vrot.slane %v1435, %v1442
    %1444 = vrot.lane.b32.xlu0 %v1439, 96
    %v1445 = vpop.permute.xlu0 %1444
    %1446 = vrot.lane.b32.xlu0 %v1443, 96
    %v1447 = vpop.permute.xlu0 %1446
    %1450 = vst.msk [vmem:[#allocation12 + $0x5] sm:$0x1] %vm359, %v1445
    %1451 = vst.msk [vmem:[#allocation12 + $0xd] sm:$0x1] %vm359, %v1447
    %v1454 = vunpack.c.l.s4 1966171168
    %v1455 = vunpack.c.0.s8 %v1454
    %v1456 = vlaneseq
    %v1457 = vshrl.u32 %v1456, 7
    %v1458 = vsub.s32 %v1455, %v1457
    %v1459 = vrot.slane %v1426, %v1458
    %v1460 = vcombine.high %v1459, %v1459
    %v1461 = vlaneseq
    %v1462 = vshrl.u32 %v1461, 7
    %v1463 = vsub.s32 0, %v1462
    %v1464 = vrot.slane %v1459, %v1463
    %v1465 = vlaneseq
    %v1466 = vshrl.u32 %v1465, 7
    %v1467 = vsub.s32 0, %v1466
    %v1468 = vrot.slane %v1460, %v1467
    %1469 = vrot.lane.b32.xlu0 %v1464, 96
    %v1470 = vpop.permute.xlu0 %1469
    %1471 = vrot.lane.b32.xlu0 %v1468, 96
    %v1472 = vpop.permute.xlu0 %1471
    %1475 = vst.msk [vmem:[#allocation13 + $0x2] sm:$0x1] %vm359, %v1470
    %1476 = vst.msk [vmem:[#allocation13 + $0xa] sm:$0x1] %vm359, %v1472
    %v1477 = vpack.c.bf16 %v1392, %v1392
    %1479 = vrot.lane.b32.xlu0 %v1477, 96
    %v1480 = vpop.permute.xlu0 %1479
    %v1482 = vsel %vm134, %v1480, 0
    %1484 = vmatprep.subr.bf16.mxu0 0
    %1485 = vmatpush1.bf16.msra.mxu0 0
    %1486 = vmatprep.subr.bf16.mxu0 0
    %1487 = vmatpush1.bf16.msra.mxu0 0
    %1488 = vmatprep.subr.bf16.mxu0 0
    %1489 = vmatpush1.bf16.msra.mxu0 0
    %1490 = vmatprep.subr.bf16.mxu0 0
    %1491 = vmatpush1.bf16.msra.mxu0 0
    %1492 = vmatprep.subr.bf16.mxu0 0
    %1493 = vmatpush1.bf16.msra.mxu0 0
    %1494 = vmatprep.subr.bf16.mxu0 0
    %1495 = vmatpush1.bf16.msra.mxu0 0
    %1496 = vmatprep.subr.bf16.mxu0 0
    %1497 = vmatpush1.bf16.msra.mxu0 %v131
    %1498 = vmatprep.subr.bf16.mxu0 0
    %1499 = vmatpush1.bf16.msra.mxu0 %v130
    %1500 = vmatprep.subr.bf16.mxu0 0
    %1501 = vmatpush2.bf16.msra.mxu0 0
    %1502 = vmatprep.subr.bf16.mxu0 0
    %1503 = vmatpush2.bf16.msra.mxu0 0
    %1504 = vmatprep.subr.bf16.mxu0 0
    %1505 = vmatpush2.bf16.msra.mxu0 0
    %1506 = vmatprep.subr.bf16.mxu0 0
    %1507 = vmatpush2.bf16.msra.mxu0 0
    %1508 = vmatprep.subr.bf16.mxu0 0
    %1509 = vmatpush2.bf16.msra.mxu0 0
    %1510 = vmatprep.subr.bf16.mxu0 0
    %1511 = vmatpush2.bf16.msra.mxu0 0
    %1512 = vmatprep.subr.bf16.mxu0 0
    %1513 = vmatpush2.bf16.msra.mxu0 0
    %1514 = vmatprep.subr.bf16.mxu0 0
    %1515 = vmatpush2.bf16.msra.mxu0 0
    %1516 = vmatprep.mubr.bf16.mxu0 0
    %1517 = vmatmul.mubr.bf16.gmra.mxu0 %v1482
    %v1518 = vpop.f32.mrf.mxu0
    %v1519 = vadd.f32 0.0, %v1518
    %v1520 = vpop.f32.mrf.mxu0
    %v1521 = vpop.f32.mrf.mxu0
    %v1522 = vpop.f32.mrf.mxu0
    %1523 = vdwg.mxu0
    %v1524 = vpack.c.bf16 %v1426, %v1426
    %1526 = vrot.lane.b32.xlu0 %v1524, 96
    %v1527 = vpop.permute.xlu0 %1526
    %v1529 = vsel %vm134, %v1527, 0
    %1531 = vmatprep.subr.bf16.mxu0 0
    %1532 = vmatpush1.bf16.msra.mxu0 0
    %1533 = vmatprep.subr.bf16.mxu0 0
    %1534 = vmatpush1.bf16.msra.mxu0 0
    %1535 = vmatprep.subr.bf16.mxu0 0
    %1536 = vmatpush1.bf16.msra.mxu0 0
    %1537 = vmatprep.subr.bf16.mxu0 0
    %1538 = vmatpush1.bf16.msra.mxu0 0
    %1539 = vmatprep.subr.bf16.mxu0 0
    %1540 = vmatpush1.bf16.msra.mxu0 0
    %1541 = vmatprep.subr.bf16.mxu0 0
    %1542 = vmatpush1.bf16.msra.mxu0 0
    %1543 = vmatprep.subr.bf16.mxu0 0
    %1544 = vmatpush1.bf16.msra.mxu0 %v188
    %1545 = vmatprep.subr.bf16.mxu0 0
    %1546 = vmatpush1.bf16.msra.mxu0 %v187
    %1547 = vmatprep.subr.bf16.mxu0 0
    %1548 = vmatpush2.bf16.msra.mxu0 0
    %1549 = vmatprep.subr.bf16.mxu0 0
    %1550 = vmatpush2.bf16.msra.mxu0 0
    %1551 = vmatprep.subr.bf16.mxu0 0
    %1552 = vmatpush2.bf16.msra.mxu0 0
    %1553 = vmatprep.subr.bf16.mxu0 0
    %1554 = vmatpush2.bf16.msra.mxu0 0
    %1555 = vmatprep.subr.bf16.mxu0 0
    %1556 = vmatpush2.bf16.msra.mxu0 0
    %1557 = vmatprep.subr.bf16.mxu0 0
    %1558 = vmatpush2.bf16.msra.mxu0 0
    %1559 = vmatprep.subr.bf16.mxu0 0
    %1560 = vmatpush2.bf16.msra.mxu0 0
    %1561 = vmatprep.subr.bf16.mxu0 0
    %1562 = vmatpush2.bf16.msra.mxu0 0
    %1563 = vmatprep.mubr.bf16.mxu0 0
    %1564 = vmatmul.mubr.bf16.gmra.mxu0 %v1529
    %v1565 = vpop.f32.mrf.mxu0
    %v1566 = vadd.f32 0.0, %v1565
    %v1567 = vpop.f32.mrf.mxu0
    %v1568 = vpop.f32.mrf.mxu0
    %v1569 = vpop.f32.mrf.mxu0
    %1570 = vdwg.mxu0
    %s1571 = scalar_lea.vmem [#allocation3], 6
    %v1572 = vld [vmem:[%s1571] sm:$0x1]
    %v1573 = vunpack.c.l.bf16 %v1572
    %s1574 = scalar_lea.vmem [#allocation6], 6
    %v1575 = vld [vmem:[%s1574] sm:$0x1]
    %v1576 = vunpack.c.l.bf16 %v1575
    %v1577 = vadd.f32 %v1573, %v1519
    %v1578 = vxor.u32 %v1577, 2147483648
    %v1579 = vmul.f32 %v1578, 1.442695
    %v1580 = vpow.pop %v1579
    %v1581 = vadd.f32 %v1580, 1.0
    %v1582 = vrcp.pop %v1581
    %v1583 = vmul.f32 1.0, %v1582
    %v1584 = vadd.f32 %v1519, %v247
    %v1587 = vunpack.c.l.s4 1983009808
    %v1588 = vunpack.c.0.s8 %v1587
    %v1589 = vlaneseq
    %v1590 = vshrl.u32 %v1589, 7
    %v1591 = vsub.s32 %v1588, %v1590
    %v1592 = vrot.slane %v1584, %v1591
    %1593 = vrot.lane.b32.xlu0 %v1592, 64
    %v1594 = vpop.permute.xlu0 %1593
    %v1596 = vmul.f32 %v1583, %v1594
    %1598 = vrot.lane.b32.xlu0 %v1596, 64
    %v1599 = vpop.permute.xlu0 %1598
    %v1601 = vadd.f32 %v1573, %v1599
    %v1602 = vtanh.pop %v1601
    %v1603 = vsub.f32 1.0, %v1583
    %1605 = vrot.lane.b32.xlu0 %v1602, 96
    %v1606 = vpop.permute.xlu0 %1605
    %v1608 = vmul.f32 %v1603, %v1606
    %v1609 = vmul.f32 %v1583, %v1392
    %v1610 = vadd.f32 %v1608, %v1609
    %v1611 = vadd.f32 %v1576, %v1566
    %v1612 = vxor.u32 %v1611, 2147483648
    %v1613 = vmul.f32 %v1612, 1.442695
    %v1614 = vpow.pop %v1613
    %v1615 = vadd.f32 %v1614, 1.0
    %v1616 = vrcp.pop %v1615
    %v1617 = vmul.f32 1.0, %v1616
    %v1618 = vadd.f32 %v1566, %v296
    %v1621 = vunpack.c.l.s4 1983009808
    %v1622 = vunpack.c.0.s8 %v1621
    %v1623 = vlaneseq
    %v1624 = vshrl.u32 %v1623, 7
    %v1625 = vsub.s32 %v1622, %v1624
    %v1626 = vrot.slane %v1618, %v1625
    %1627 = vrot.lane.b32.xlu0 %v1626, 64
    %v1628 = vpop.permute.xlu0 %1627
    %v1630 = vmul.f32 %v1617, %v1628
    %1632 = vrot.lane.b32.xlu0 %v1630, 64
    %v1633 = vpop.permute.xlu0 %1632
    %v1635 = vadd.f32 %v1576, %v1633
    %v1636 = vtanh.pop %v1635
    %v1637 = vsub.f32 1.0, %v1617
    %1639 = vrot.lane.b32.xlu0 %v1636, 96
    %v1640 = vpop.permute.xlu0 %1639
    %v1642 = vmul.f32 %v1637, %v1640
    %v1643 = vmul.f32 %v1617, %v1426
    %v1644 = vadd.f32 %v1642, %v1643
    %v1647 = vunpack.c.l.s4 1966171168
    %v1648 = vunpack.c.0.s8 %v1647
    %v1649 = vlaneseq
    %v1650 = vshrl.u32 %v1649, 7
    %v1651 = vsub.s32 %v1648, %v1650
    %v1652 = vrot.slane %v1610, %v1651
    %v1653 = vcombine.high %v1652, %v1652
    %v1654 = vlaneseq
    %v1655 = vshrl.u32 %v1654, 7
    %v1656 = vsub.s32 0, %v1655
    %v1657 = vrot.slane %v1652, %v1656
    %v1658 = vlaneseq
    %v1659 = vshrl.u32 %v1658, 7
    %v1660 = vsub.s32 0, %v1659
    %v1661 = vrot.slane %v1653, %v1660
    %1662 = vrot.lane.b32.xlu0 %v1657, 96
    %v1663 = vpop.permute.xlu0 %1662
    %1664 = vrot.lane.b32.xlu0 %v1661, 96
    %v1665 = vpop.permute.xlu0 %1664
    %1668 = vst.msk [vmem:[#allocation12 + $0x6] sm:$0x1] %vm359, %v1663
    %1669 = vst.msk [vmem:[#allocation12 + $0xe] sm:$0x1] %vm359, %v1665
    %v1672 = vunpack.c.l.s4 1966171168
    %v1673 = vunpack.c.0.s8 %v1672
    %v1674 = vlaneseq
    %v1675 = vshrl.u32 %v1674, 7
    %v1676 = vsub.s32 %v1673, %v1675
    %v1677 = vrot.slane %v1644, %v1676
    %v1678 = vcombine.high %v1677, %v1677
    %v1679 = vlaneseq
    %v1680 = vshrl.u32 %v1679, 7
    %v1681 = vsub.s32 0, %v1680
    %v1682 = vrot.slane %v1677, %v1681
    %v1683 = vlaneseq
    %v1684 = vshrl.u32 %v1683, 7
    %v1685 = vsub.s32 0, %v1684
    %v1686 = vrot.slane %v1678, %v1685
    %1687 = vrot.lane.b32.xlu0 %v1682, 96
    %v1688 = vpop.permute.xlu0 %1687
    %1689 = vrot.lane.b32.xlu0 %v1686, 96
    %v1690 = vpop.permute.xlu0 %1689
    %1693 = vst.msk [vmem:[#allocation13 + $0x1] sm:$0x1] %vm359, %v1688
    %1694 = vst.msk [vmem:[#allocation13 + $0x9] sm:$0x1] %vm359, %v1690
    %v1695 = vpack.c.bf16 %v1610, %v1610
    %1697 = vrot.lane.b32.xlu0 %v1695, 96
    %v1698 = vpop.permute.xlu0 %1697
    %v1700 = vsel %vm134, %v1698, 0
    %1702 = vmatprep.subr.bf16.mxu0 0
    %1703 = vmatpush1.bf16.msra.mxu0 0
    %1704 = vmatprep.subr.bf16.mxu0 0
    %1705 = vmatpush1.bf16.msra.mxu0 0
    %1706 = vmatprep.subr.bf16.mxu0 0
    %1707 = vmatpush1.bf16.msra.mxu0 0
    %1708 = vmatprep.subr.bf16.mxu0 0
    %1709 = vmatpush1.bf16.msra.mxu0 0
    %1710 = vmatprep.subr.bf16.mxu0 0
    %1711 = vmatpush1.bf16.msra.mxu0 0
    %1712 = vmatprep.subr.bf16.mxu0 0
    %1713 = vmatpush1.bf16.msra.mxu0 0
    %1714 = vmatprep.subr.bf16.mxu0 0
    %1715 = vmatpush1.bf16.msra.mxu0 %v131
    %1716 = vmatprep.subr.bf16.mxu0 0
    %1717 = vmatpush1.bf16.msra.mxu0 %v130
    %1718 = vmatprep.subr.bf16.mxu0 0
    %1719 = vmatpush2.bf16.msra.mxu0 0
    %1720 = vmatprep.subr.bf16.mxu0 0
    %1721 = vmatpush2.bf16.msra.mxu0 0
    %1722 = vmatprep.subr.bf16.mxu0 0
    %1723 = vmatpush2.bf16.msra.mxu0 0
    %1724 = vmatprep.subr.bf16.mxu0 0
    %1725 = vmatpush2.bf16.msra.mxu0 0
    %1726 = vmatprep.subr.bf16.mxu0 0
    %1727 = vmatpush2.bf16.msra.mxu0 0
    %1728 = vmatprep.subr.bf16.mxu0 0
    %1729 = vmatpush2.bf16.msra.mxu0 0
    %1730 = vmatprep.subr.bf16.mxu0 0
    %1731 = vmatpush2.bf16.msra.mxu0 0
    %1732 = vmatprep.subr.bf16.mxu0 0
    %1733 = vmatpush2.bf16.msra.mxu0 0
    %1734 = vmatprep.mubr.bf16.mxu0 0
    %1735 = vmatmul.mubr.bf16.gmra.mxu0 %v1700
    %v1736 = vpop.f32.mrf.mxu0
    %v1737 = vadd.f32 0.0, %v1736
    %v1738 = vpop.f32.mrf.mxu0
    %v1739 = vpop.f32.mrf.mxu0
    %v1740 = vpop.f32.mrf.mxu0
    %1741 = vdwg.mxu0
    %v1742 = vpack.c.bf16 %v1644, %v1644
    %1744 = vrot.lane.b32.xlu0 %v1742, 96
    %v1745 = vpop.permute.xlu0 %1744
    %v1747 = vsel %vm134, %v1745, 0
    %1749 = vmatprep.subr.bf16.mxu0 0
    %1750 = vmatpush1.bf16.msra.mxu0 0
    %1751 = vmatprep.subr.bf16.mxu0 0
    %1752 = vmatpush1.bf16.msra.mxu0 0
    %1753 = vmatprep.subr.bf16.mxu0 0
    %1754 = vmatpush1.bf16.msra.mxu0 0
    %1755 = vmatprep.subr.bf16.mxu0 0
    %1756 = vmatpush1.bf16.msra.mxu0 0
    %1757 = vmatprep.subr.bf16.mxu0 0
    %1758 = vmatpush1.bf16.msra.mxu0 0
    %1759 = vmatprep.subr.bf16.mxu0 0
    %1760 = vmatpush1.bf16.msra.mxu0 0
    %1761 = vmatprep.subr.bf16.mxu0 0
    %1762 = vmatpush1.bf16.msra.mxu0 %v188
    %1763 = vmatprep.subr.bf16.mxu0 0
    %1764 = vmatpush1.bf16.msra.mxu0 %v187
    %1765 = vmatprep.subr.bf16.mxu0 0
    %1766 = vmatpush2.bf16.msra.mxu0 0
    %1767 = vmatprep.subr.bf16.mxu0 0
    %1768 = vmatpush2.bf16.msra.mxu0 0
    %1769 = vmatprep.subr.bf16.mxu0 0
    %1770 = vmatpush2.bf16.msra.mxu0 0
    %1771 = vmatprep.subr.bf16.mxu0 0
    %1772 = vmatpush2.bf16.msra.mxu0 0
    %1773 = vmatprep.subr.bf16.mxu0 0
    %1774 = vmatpush2.bf16.msra.mxu0 0
    %1775 = vmatprep.subr.bf16.mxu0 0
    %1776 = vmatpush2.bf16.msra.mxu0 0
    %1777 = vmatprep.subr.bf16.mxu0 0
    %1778 = vmatpush2.bf16.msra.mxu0 0
    %1779 = vmatprep.subr.bf16.mxu0 0
    %1780 = vmatpush2.bf16.msra.mxu0 0
    %1781 = vmatprep.mubr.bf16.mxu0 0
    %1782 = vmatmul.mubr.bf16.gmra.mxu0 %v1747
    %v1783 = vpop.f32.mrf.mxu0
    %v1784 = vadd.f32 0.0, %v1783
    %v1785 = vpop.f32.mrf.mxu0
    %v1786 = vpop.f32.mrf.mxu0
    %v1787 = vpop.f32.mrf.mxu0
    %1788 = vdwg.mxu0
    %s1789 = scalar_lea.vmem [#allocation3], 7
    %v1790 = vld [vmem:[%s1789] sm:$0x1]
    %v1791 = vunpack.c.l.bf16 %v1790
    %s1792 = scalar_lea.vmem [#allocation6], 7
    %v1793 = vld [vmem:[%s1792] sm:$0x1]
    %v1794 = vunpack.c.l.bf16 %v1793
    %v1795 = vadd.f32 %v1791, %v1737
    %v1796 = vxor.u32 %v1795, 2147483648
    %v1797 = vmul.f32 %v1796, 1.442695
    %v1798 = vpow.pop %v1797
    %v1799 = vadd.f32 %v1798, 1.0
    %v1800 = vrcp.pop %v1799
    %v1801 = vmul.f32 1.0, %v1800
    %v1802 = vadd.f32 %v1737, %v247
    %v1805 = vunpack.c.l.s4 1983009808
    %v1806 = vunpack.c.0.s8 %v1805
    %v1807 = vlaneseq
    %v1808 = vshrl.u32 %v1807, 7
    %v1809 = vsub.s32 %v1806, %v1808
    %v1810 = vrot.slane %v1802, %v1809
    %1811 = vrot.lane.b32.xlu0 %v1810, 64
    %v1812 = vpop.permute.xlu0 %1811
    %v1814 = vmul.f32 %v1801, %v1812
    %1816 = vrot.lane.b32.xlu0 %v1814, 64
    %v1817 = vpop.permute.xlu0 %1816
    %v1819 = vadd.f32 %v1791, %v1817
    %v1820 = vtanh.pop %v1819
    %v1821 = vsub.f32 1.0, %v1801
    %1823 = vrot.lane.b32.xlu0 %v1820, 96
    %v1824 = vpop.permute.xlu0 %1823
    %v1826 = vmul.f32 %v1821, %v1824
    %v1827 = vmul.f32 %v1801, %v1610
    %v1828 = vadd.f32 %v1826, %v1827
    %v1829 = vadd.f32 %v1794, %v1784
    %v1830 = vxor.u32 %v1829, 2147483648
    %v1831 = vmul.f32 %v1830, 1.442695
    %v1832 = vpow.pop %v1831
    %v1833 = vadd.f32 %v1832, 1.0
    %v1834 = vrcp.pop %v1833
    %v1835 = vmul.f32 1.0, %v1834
    %v1836 = vadd.f32 %v1784, %v296
    %v1839 = vunpack.c.l.s4 1983009808
    %v1840 = vunpack.c.0.s8 %v1839
    %v1841 = vlaneseq
    %v1842 = vshrl.u32 %v1841, 7
    %v1843 = vsub.s32 %v1840, %v1842
    %v1844 = vrot.slane %v1836, %v1843
    %1845 = vrot.lane.b32.xlu0 %v1844, 64
    %v1846 = vpop.permute.xlu0 %1845
    %v1848 = vmul.f32 %v1835, %v1846
    %1850 = vrot.lane.b32.xlu0 %v1848, 64
    %v1851 = vpop.permute.xlu0 %1850
    %v1853 = vadd.f32 %v1794, %v1851
    %v1854 = vtanh.pop %v1853
    %v1855 = vsub.f32 1.0, %v1835
    %1857 = vrot.lane.b32.xlu0 %v1854, 96
    %v1858 = vpop.permute.xlu0 %1857
    %v1860 = vmul.f32 %v1855, %v1858
    %v1861 = vmul.f32 %v1835, %v1644
    %v1862 = vadd.f32 %v1860, %v1861
    %v1865 = vunpack.c.l.s4 1966171168
    %v1866 = vunpack.c.0.s8 %v1865
    %v1867 = vlaneseq
    %v1868 = vshrl.u32 %v1867, 7
    %v1869 = vsub.s32 %v1866, %v1868
    %v1870 = vrot.slane %v1828, %v1869
    %v1871 = vcombine.high %v1870, %v1870
    %v1872 = vlaneseq
    %v1873 = vshrl.u32 %v1872, 7
    %v1874 = vsub.s32 0, %v1873
    %v1875 = vrot.slane %v1870, %v1874
    %v1876 = vlaneseq
    %v1877 = vshrl.u32 %v1876, 7
    %v1878 = vsub.s32 0, %v1877
    %v1879 = vrot.slane %v1871, %v1878
    %1880 = vrot.lane.b32.xlu0 %v1875, 96
    %v1881 = vpop.permute.xlu0 %1880
    %1882 = vrot.lane.b32.xlu0 %v1879, 96
    %v1883 = vpop.permute.xlu0 %1882
    %1886 = vst.msk [vmem:[#allocation12 + $0x7] sm:$0x1] %vm359, %v1881
    %1887 = vst.msk [vmem:[#allocation12 + $0xf] sm:$0x1] %vm359, %v1883
    %v1890 = vunpack.c.l.s4 1966171168
    %v1891 = vunpack.c.0.s8 %v1890
    %v1892 = vlaneseq
    %v1893 = vshrl.u32 %v1892, 7
    %v1894 = vsub.s32 %v1891, %v1893
    %v1895 = vrot.slane %v1862, %v1894
    %v1896 = vcombine.high %v1895, %v1895
    %v1897 = vlaneseq
    %v1898 = vshrl.u32 %v1897, 7
    %v1899 = vsub.s32 0, %v1898
    %v1900 = vrot.slane %v1895, %v1899
    %v1901 = vlaneseq
    %v1902 = vshrl.u32 %v1901, 7
    %v1903 = vsub.s32 0, %v1902
    %v1904 = vrot.slane %v1896, %v1903
    %1905 = vrot.lane.b32.xlu0 %v1900, 96
    %v1906 = vpop.permute.xlu0 %1905
    %1907 = vrot.lane.b32.xlu0 %v1904, 96
    %v1908 = vpop.permute.xlu0 %1907
    %1911 = vst.msk [vmem:[#allocation13] sm:$0x1] %vm359, %v1906
    %1912 = vst.msk [vmem:[#allocation13 + $0x8] sm:$0x1] %vm359, %v1908
    %v1914 = vunpack.c.l.s4 1983009808
    %v1915 = vunpack.c.0.s8 %v1914
    %v1916 = vlaneseq
    %v1917 = vshrl.u32 %v1916, 7
    %v1918 = vsub.s32 %v1915, %v1917
    %v1919 = vrot.slane %v1828, %v1918
    %1920 = vrot.lane.b32.xlu0 %v1919, 96
    %v1921 = vpop.permute.xlu0 %1920
    %vm1923 = vcmask 254976
    %1924 = vst.msk [vmem:[#allocation2] sm:$0x3] %vm1923, %v1921
    %v1926 = vunpack.c.l.s4 1983009808
    %v1927 = vunpack.c.0.s8 %v1926
    %v1928 = vlaneseq
    %v1929 = vshrl.u32 %v1928, 7
    %v1930 = vsub.s32 %v1927, %v1929
    %v1931 = vrot.slane %v1862, %v1930
    %1932 = vrot.lane.b32.xlu0 %v1931, 96
    %v1933 = vpop.permute.xlu0 %1932
    %1935 = vst.msk [vmem:[%s119] sm:$0x3] %vm1923, %v1933
    // Predicated region
    $region50: #{tpu_custom_call.1} parent=1 // pred_check
      %p1936 = pneg %p98
    $region51: #{tpu_custom_call.1} parent=1 // pred_check_branch
      %1938 = sbr.rel (%p1936) target = $region53
    $region52: #{tpu_custom_call.1} parent=1 // pred_region
      %1939 = vst.msk [vmem:[#allocation15] sm:$0x3] %vm1923, %v1921
      %s1940 = scalar_lea.vmem [#allocation15], 2
      %1941 = vst.msk [vmem:[%s1940] sm:$0x3] %vm1923, %v1933
    $region53: #{tpu_custom_call.1} parent=1 // pred_fallthru
      _
    // Predicated region
    $region54: #{tpu_custom_call.1} parent=1 // pred_check
      _
    $region55: #{tpu_custom_call.1} parent=1 // pred_check_branch
      %1943 = sbr.rel (0) target = $region57
    $region56: #{tpu_custom_call.1} parent=1 // pred_region
      %s1945 = ssub.s32 256, 256
      %1946 = vsyncadd [#allocation5], %s1945
      %s1947 = sshll.u32 [#allocation12], 4
      %s1948 = int_to_ptr.vmem [resolvable:$true] %s1947
      %1953 = dma.vmem_to_hbm [thread:$0]  %s1948, 256, %s6, [#allocation5], 128, 128, 8
    $region57: #{tpu_custom_call.1} parent=1 // pred_fallthru
      _
    // Predicated region
    $region58: #{tpu_custom_call.1} parent=1 // pred_check
      _
    $region59: #{tpu_custom_call.1} parent=1 // pred_check_branch
      %1955 = sbr.rel (0) target = $region61
    $region60: #{tpu_custom_call.1} parent=1 // pred_region
      %s1956 = ssub.s32 0, 0
      %s1958 = ssub.s32 256, 256
      %1959 = vsyncadd [#allocation14], %s1958
      %s1960 = smul.addr %s1956, 128
      %s1961 = scalar_lea.hbm %s7, %s1960
      %s1962 = sshll.u32 [#allocation13], 4
      %s1963 = int_to_ptr.vmem [resolvable:$true] %s1962
      %1968 = dma.vmem_to_hbm [thread:$0]  %s1963, 256, %s1961, [#allocation14], 128, 128, 8
    $region61: #{tpu_custom_call.1} parent=1 // pred_fallthru
      _
    // Predicated region
    $region62: #{tpu_custom_call.1} parent=1 // pred_check
      _
    $region63: #{tpu_custom_call.1} parent=1 // pred_check_branch
      %1970 = sbr.rel (0) target = $region65
    $region64: #{tpu_custom_call.1} parent=1 // pred_region
      %s1972 = ssub.s32 64, 64
      %1973 = vsyncadd [#allocation14], %s1972
      %s1974 = sshll.u32 [#allocation15], 4
      %s1975 = int_to_ptr.vmem [resolvable:$true] %s1974
      %1980 = dma.vmem_to_hbm [thread:$0]  %s1975, 64, %s8, [#allocation14], 32, 32, 2
    $region65: #{tpu_custom_call.1} parent=1 // pred_fallthru
      _
    // Predicated region
    $region66: #{tpu_custom_call.1} parent=1 // pred_check
      _
    $region67: #{tpu_custom_call.1} parent=1 // pred_check_branch
      %1982 = sbr.rel (0) target = $region69
    $region68: #{tpu_custom_call.1} parent=1 // pred_region
      %1983 = dma.done [#allocation5], 256
    $region69: #{tpu_custom_call.1} parent=1 // pred_fallthru
      _
    // Predicated region
    $region70: #{tpu_custom_call.1} parent=1 // pred_check
      _
    $region71: #{tpu_custom_call.1} parent=1 // pred_check_branch
      %1985 = sbr.rel (0) target = $region73
    $region72: #{tpu_custom_call.1} parent=1 // pred_region
      %1986 = dma.done [#allocation14], 256
    $region73: #{tpu_custom_call.1} parent=1 // pred_fallthru
      _
    // Predicated region
    $region74: #{tpu_custom_call.1} parent=1 // pred_check
      _
    $region75: #{tpu_custom_call.1} parent=1 // pred_check_branch
      %1988 = sbr.rel (0) target = $region77
    $region76: #{tpu_custom_call.1} parent=1 // pred_region
      %1989 = dma.done [#allocation14], 64
    $region77: #{tpu_custom_call.1} parent=1 // pred_fallthru
      _
    %1990 = vsyncpa [#allocation4], 1
    %1991 = vsyncpa [#allocation7], 1
    %1992 = vsyncpa [#allocation10], 1
    %1993 = vsyncpa [#allocation5], 1
    %1994 = vsyncpa [#allocation14], 1

</llo_original>
